<compile_context>
chip_gen: v5e
topology: v5e:2x2
jax: 0.10.0
libtpu: 0.0.40
codegen_flags: <defaults>
</compile_context>

<pallas_src>
import jax
import jax.numpy as jnp
from jax.experimental import pallas as pl
from jax.experimental.pallas import tpu as pltpu

_LANES = 128      # vreg lane width
_SUBLANES = 8     # f32 sublanes per vreg
_IN, _HID, _OUT = 2, 10, 2


def radialnet_kernel(x_ref, w1_ref, b1_ref, w2_ref, b2_ref, w3_ref, b3_ref, o_ref):
    """One grid step.

    x_ref: [2, R, 128] VMEM block (feature, sublane-tile, lane).
    w*/b* : whole tensors in SMEM (torch layout: w[out, in], b[out]).
    o_ref: [2, R, 128] VMEM block.

    Work is chunked into [8, 128] vreg tiles so at most ~25 vregs are live at
    once (x rows + h1 + h2) — no spilling — and every VPU op runs at full
    lane/sublane density.
    """
    r = x_ref.shape[1]                       # static block dim
    for s in range(r // _SUBLANES):          # unrolled inner loop over vreg tiles
        lo, hi = s * _SUBLANES, (s + 1) * _SUBLANES

        x0 = x_ref[0, lo:hi, :]              # [8, 128] — one full vreg
        x1 = x_ref[1, lo:hi, :]

        # fc1 (2 -> 10) + ReLU : scalar-broadcast VPU FMAs
        h1 = []
        for f in range(_HID):
            a = x0 * w1_ref[f, 0] + x1 * w1_ref[f, 1] + b1_ref[f]
            h1.append(jnp.maximum(a, 0.0))

        # fc2 (10 -> 10) + ReLU
        h2 = []
        for f in range(_HID):
            a = h1[0] * w2_ref[f, 0]
            for k in range(1, _HID):
                a = a + h1[k] * w2_ref[f, k]
            h2.append(jnp.maximum(a + b2_ref[f], 0.0))

        # fc3 (10 -> 2), no activation
        for f in range(_OUT):
            a = h2[0] * w3_ref[f, 0]
            for k in range(1, _HID):
                a = a + h2[k] * w3_ref[f, k]
            o_ref[f, lo:hi, :] = a + b3_ref[f]


def radialnet_forward(x, params, *, block_rows=64):
    """x: [N, 2] float32. params: torch-layout dict (w: [out, in], b: [out])."""
    n = x.shape[0]

    # Round the requested tile (in sublane-tiles) to a multiple of 8.
    block_rows = max(_SUBLANES, -(-block_rows // _SUBLANES) * _SUBLANES)

    n_tiles = -(-n // _LANES)                                   # ceil(N / 128)
    r = min(block_rows, -(-n_tiles // _SUBLANES) * _SUBLANES)   # tile in sublane-tiles
    n_tiles_pad = -(-n_tiles // r) * r
    n_pad = n_tiles_pad * _LANES
    grid = (n_tiles_pad // r,)

    # Batch onto the lane axis: [N, 2] -> [2, n_pad] -> [2, M, 128].
    x_p = jnp.pad(x.astype(jnp.float32), ((0, n_pad - n), (0, 0)))
    x_t = x_p.T.reshape(_IN, n_tiles_pad, _LANES)

    smem = pl.BlockSpec(memory_space=pltpu.MemorySpace.SMEM)

    def batch_spec(nfeat):
        return pl.BlockSpec((nfeat, r, _LANES), lambda i: (0, i, 0))

    cost = pl.CostEstimate(
        flops=280 * n_pad,                   # 2*(2*10 + 10*10 + 10*2) per row
        transcendentals=0,
        bytes_accessed=16 * n_pad + 608,     # f32 x + out, plus params
    )

    out_t = pl.pallas_call(
        radialnet_kernel,
        out_shape=jax.ShapeDtypeStruct((_OUT, n_tiles_pad, _LANES), jnp.float32),
        grid=grid,
        in_specs=[batch_spec(_IN), smem, smem, smem, smem, smem, smem],
        out_specs=batch_spec(_OUT),
        compiler_params=pltpu.CompilerParams(
            dimension_semantics=("parallel",)),
        cost_estimate=cost,
    )(x_t, params["w1"], params["b1"], params["w2"], params["b2"],
      params["w3"], params["b3"])

    # [2, M, 128] -> [2, n_pad] -> [N, 2]
    return out_t.reshape(_OUT, n_pad).T[:n]


def init_params(key):
    """PyTorch nn.Linear default init (U[-1/sqrt(fan_in), +]); torch layout."""
    def linear(k, fan_in, fan_out):
        kw, kb = jax.random.split(k)
        bound = float(fan_in) ** -0.5
        w = jax.random.uniform(kw, (fan_out, fan_in), jnp.float32, -bound, bound)
        b = jax.random.uniform(kb, (fan_out,), jnp.float32, -bound, bound)
        return w, b

    k1, k2, k3 = jax.random.split(key, 3)
    w1, b1 = linear(k1, _IN, _HID)
    w2, b2 = linear(k2, _HID, _HID)
    w3, b3 = linear(k3, _HID, _OUT)
    return {"w1": w1, "b1": b1, "w2": w2, "b2": b2, "w3": w3, "b3": b3}


def radialnet_reference(x, p):
    """Pure-JAX reference (matches torch layout: y = x @ W.T + b)."""
    h = jnp.maximum(x @ p["w1"].T + p["b1"], 0.0)
    h = jnp.maximum(h @ p["w2"].T + p["b2"], 0.0)
    return h @ p["w3"].T + p["b3"]


if __name__ == "__main__":
    key = jax.random.PRNGKey(0)
    k_params, k_x = jax.random.split(key)

    params = init_params(k_params)

    # Small batch (module-sized input: [N, 2] radial points).
    x = jax.random.normal(k_x, (8, 2), jnp.float32)
    out = jax.block_until_ready(radialnet_forward(x, params))
    ref = radialnet_reference(x, params)
    assert out.shape == (8, 2)
    assert jnp.allclose(out, ref, atol=1e-5, rtol=1e-5), "mismatch vs reference (N=8)"

    # Exercise the multi-step grid + non-divisible-batch padding path.
    x2 = jax.random.normal(k_x, (2300, 2), jnp.float32)
    out2 = jax.block_until_ready(radialnet_forward(x2, params, block_rows=8))
    ref2 = radialnet_reference(x2, params)
    assert out2.shape == (2300, 2)
    assert jnp.allclose(out2, ref2, atol=1e-5, rtol=1e-5), "mismatch vs reference (N=2300)"

    print("KERNEL_OK")
</pallas_src>

<mosaic_0001>
module attributes {stable_mosaic.version = 11 : i64} {
  func.func @radialnet_kernel(%arg0: i32, %arg1: memref<2x8x128xf32, #tpu.memory_space<vmem>>, %arg2: memref<10x2xf32, #tpu.memory_space<smem>>, %arg3: memref<10xf32, #tpu.memory_space<smem>>, %arg4: memref<10x10xf32, #tpu.memory_space<smem>>, %arg5: memref<10xf32, #tpu.memory_space<smem>>, %arg6: memref<2x10xf32, #tpu.memory_space<smem>>, %arg7: memref<2xf32, #tpu.memory_space<smem>>, %arg8: memref<2x8x128xf32, #tpu.memory_space<vmem>>) attributes {dimension_semantics = [#tpu.dimension_semantics<parallel>], iteration_bounds = array<i64: 1>, scalar_prefetch = 0 : i64, scratch_operands = 0 : i64, tpu.core_type = #tpu.core_type<tc>, window_params = [{transform_indices = @transform_0, window_bounds = array<i64: 2, 8, 128>}, {transform_indices = @transform_1, window_bounds = array<i64: 10, 2>}, {transform_indices = @transform_2, window_bounds = array<i64: 10>}, {transform_indices = @transform_3, window_bounds = array<i64: 10, 10>}, {transform_indices = @transform_4, window_bounds = array<i64: 10>}, {transform_indices = @transform_5, window_bounds = array<i64: 2, 10>}, {transform_indices = @transform_6, window_bounds = array<i64: 2>}, {transform_indices = @transform_7, window_bounds = array<i64: 2, 8, 128>}]} {
    %c0 = arith.constant 0 : index
    %c0_0 = arith.constant 0 : index
    %c0_1 = arith.constant 0 : index
    %0 = vector.load %arg1[%c0, %c0_0, %c0_1] : memref<2x8x128xf32, #tpu.memory_space<vmem>>, vector<1x8x128xf32>
    %1 = vector.shape_cast %0 : vector<1x8x128xf32> to vector<8x128xf32>
    %c1 = arith.constant 1 : index
    %c0_2 = arith.constant 0 : index
    %c0_3 = arith.constant 0 : index
    %2 = vector.load %arg1[%c1, %c0_2, %c0_3] : memref<2x8x128xf32, #tpu.memory_space<vmem>>, vector<1x8x128xf32>
    %3 = vector.shape_cast %2 : vector<1x8x128xf32> to vector<8x128xf32>
    %c0_4 = arith.constant 0 : index
    %c0_5 = arith.constant 0 : index
    %4 = memref.load %arg2[%c0_4, %c0_5] : memref<10x2xf32, #tpu.memory_space<smem>>
    %5 = vector.broadcast %4 : f32 to vector<8x128xf32>
    %6 = arith.mulf %1, %5 : vector<8x128xf32>
    %c0_6 = arith.constant 0 : index
    %c1_7 = arith.constant 1 : index
    %7 = memref.load %arg2[%c0_6, %c1_7] : memref<10x2xf32, #tpu.memory_space<smem>>
    %8 = vector.broadcast %7 : f32 to vector<8x128xf32>
    %9 = arith.mulf %3, %8 : vector<8x128xf32>
    %10 = arith.addf %6, %9 : vector<8x128xf32>
    %c0_8 = arith.constant 0 : index
    %11 = memref.load %arg3[%c0_8] : memref<10xf32, #tpu.memory_space<smem>>
    %12 = vector.broadcast %11 : f32 to vector<8x128xf32>
    %13 = arith.addf %10, %12 : vector<8x128xf32>
    %cst = arith.constant 0.000000e+00 : f32
    %14 = vector.broadcast %cst : f32 to vector<8x128xf32>
    %15 = arith.maximumf %13, %14 : vector<8x128xf32>
    %c1_9 = arith.constant 1 : index
    %c0_10 = arith.constant 0 : index
    %16 = memref.load %arg2[%c1_9, %c0_10] : memref<10x2xf32, #tpu.memory_space<smem>>
    %17 = vector.broadcast %16 : f32 to vector<8x128xf32>
    %18 = arith.mulf %1, %17 : vector<8x128xf32>
    %c1_11 = arith.constant 1 : index
    %c1_12 = arith.constant 1 : index
    %19 = memref.load %arg2[%c1_11, %c1_12] : memref<10x2xf32, #tpu.memory_space<smem>>
    %20 = vector.broadcast %19 : f32 to vector<8x128xf32>
    %21 = arith.mulf %3, %20 : vector<8x128xf32>
    %22 = arith.addf %18, %21 : vector<8x128xf32>
    %c1_13 = arith.constant 1 : index
    %23 = memref.load %arg3[%c1_13] : memref<10xf32, #tpu.memory_space<smem>>
    %24 = vector.broadcast %23 : f32 to vector<8x128xf32>
    %25 = arith.addf %22, %24 : vector<8x128xf32>
    %cst_14 = arith.constant 0.000000e+00 : f32
    %26 = vector.broadcast %cst_14 : f32 to vector<8x128xf32>
    %27 = arith.maximumf %25, %26 : vector<8x128xf32>
    %c2 = arith.constant 2 : index
    %c0_15 = arith.constant 0 : index
    %28 = memref.load %arg2[%c2, %c0_15] : memref<10x2xf32, #tpu.memory_space<smem>>
    %29 = vector.broadcast %28 : f32 to vector<8x128xf32>
    %30 = arith.mulf %1, %29 : vector<8x128xf32>
    %c2_16 = arith.constant 2 : index
    %c1_17 = arith.constant 1 : index
    %31 = memref.load %arg2[%c2_16, %c1_17] : memref<10x2xf32, #tpu.memory_space<smem>>
    %32 = vector.broadcast %31 : f32 to vector<8x128xf32>
    %33 = arith.mulf %3, %32 : vector<8x128xf32>
    %34 = arith.addf %30, %33 : vector<8x128xf32>
    %c2_18 = arith.constant 2 : index
    %35 = memref.load %arg3[%c2_18] : memref<10xf32, #tpu.memory_space<smem>>
    %36 = vector.broadcast %35 : f32 to vector<8x128xf32>
    %37 = arith.addf %34, %36 : vector<8x128xf32>
    %cst_19 = arith.constant 0.000000e+00 : f32
    %38 = vector.broadcast %cst_19 : f32 to vector<8x128xf32>
    %39 = arith.maximumf %37, %38 : vector<8x128xf32>
    %c3 = arith.constant 3 : index
    %c0_20 = arith.constant 0 : index
    %40 = memref.load %arg2[%c3, %c0_20] : memref<10x2xf32, #tpu.memory_space<smem>>
    %41 = vector.broadcast %40 : f32 to vector<8x128xf32>
    %42 = arith.mulf %1, %41 : vector<8x128xf32>
    %c3_21 = arith.constant 3 : index
    %c1_22 = arith.constant 1 : index
    %43 = memref.load %arg2[%c3_21, %c1_22] : memref<10x2xf32, #tpu.memory_space<smem>>
    %44 = vector.broadcast %43 : f32 to vector<8x128xf32>
    %45 = arith.mulf %3, %44 : vector<8x128xf32>
    %46 = arith.addf %42, %45 : vector<8x128xf32>
    %c3_23 = arith.constant 3 : index
    %47 = memref.load %arg3[%c3_23] : memref<10xf32, #tpu.memory_space<smem>>
    %48 = vector.broadcast %47 : f32 to vector<8x128xf32>
    %49 = arith.addf %46, %48 : vector<8x128xf32>
    %cst_24 = arith.constant 0.000000e+00 : f32
    %50 = vector.broadcast %cst_24 : f32 to vector<8x128xf32>
    %51 = arith.maximumf %49, %50 : vector<8x128xf32>
    %c4 = arith.constant 4 : index
    %c0_25 = arith.constant 0 : index
    %52 = memref.load %arg2[%c4, %c0_25] : memref<10x2xf32, #tpu.memory_space<smem>>
    %53 = vector.broadcast %52 : f32 to vector<8x128xf32>
    %54 = arith.mulf %1, %53 : vector<8x128xf32>
    %c4_26 = arith.constant 4 : index
    %c1_27 = arith.constant 1 : index
    %55 = memref.load %arg2[%c4_26, %c1_27] : memref<10x2xf32, #tpu.memory_space<smem>>
    %56 = vector.broadcast %55 : f32 to vector<8x128xf32>
    %57 = arith.mulf %3, %56 : vector<8x128xf32>
    %58 = arith.addf %54, %57 : vector<8x128xf32>
    %c4_28 = arith.constant 4 : index
    %59 = memref.load %arg3[%c4_28] : memref<10xf32, #tpu.memory_space<smem>>
    %60 = vector.broadcast %59 : f32 to vector<8x128xf32>
    %61 = arith.addf %58, %60 : vector<8x128xf32>
    %cst_29 = arith.constant 0.000000e+00 : f32
    %62 = vector.broadcast %cst_29 : f32 to vector<8x128xf32>
    %63 = arith.maximumf %61, %62 : vector<8x128xf32>
    %c5 = arith.constant 5 : index
    %c0_30 = arith.constant 0 : index
    %64 = memref.load %arg2[%c5, %c0_30] : memref<10x2xf32, #tpu.memory_space<smem>>
    %65 = vector.broadcast %64 : f32 to vector<8x128xf32>
    %66 = arith.mulf %1, %65 : vector<8x128xf32>
    %c5_31 = arith.constant 5 : index
    %c1_32 = arith.constant 1 : index
    %67 = memref.load %arg2[%c5_31, %c1_32] : memref<10x2xf32, #tpu.memory_space<smem>>
    %68 = vector.broadcast %67 : f32 to vector<8x128xf32>
    %69 = arith.mulf %3, %68 : vector<8x128xf32>
    %70 = arith.addf %66, %69 : vector<8x128xf32>
    %c5_33 = arith.constant 5 : index
    %71 = memref.load %arg3[%c5_33] : memref<10xf32, #tpu.memory_space<smem>>
    %72 = vector.broadcast %71 : f32 to vector<8x128xf32>
    %73 = arith.addf %70, %72 : vector<8x128xf32>
    %cst_34 = arith.constant 0.000000e+00 : f32
    %74 = vector.broadcast %cst_34 : f32 to vector<8x128xf32>
    %75 = arith.maximumf %73, %74 : vector<8x128xf32>
    %c6 = arith.constant 6 : index
    %c0_35 = arith.constant 0 : index
    %76 = memref.load %arg2[%c6, %c0_35] : memref<10x2xf32, #tpu.memory_space<smem>>
    %77 = vector.broadcast %76 : f32 to vector<8x128xf32>
    %78 = arith.mulf %1, %77 : vector<8x128xf32>
    %c6_36 = arith.constant 6 : index
    %c1_37 = arith.constant 1 : index
    %79 = memref.load %arg2[%c6_36, %c1_37] : memref<10x2xf32, #tpu.memory_space<smem>>
    %80 = vector.broadcast %79 : f32 to vector<8x128xf32>
    %81 = arith.mulf %3, %80 : vector<8x128xf32>
    %82 = arith.addf %78, %81 : vector<8x128xf32>
    %c6_38 = arith.constant 6 : index
    %83 = memref.load %arg3[%c6_38] : memref<10xf32, #tpu.memory_space<smem>>
    %84 = vector.broadcast %83 : f32 to vector<8x128xf32>
    %85 = arith.addf %82, %84 : vector<8x128xf32>
    %cst_39 = arith.constant 0.000000e+00 : f32
    %86 = vector.broadcast %cst_39 : f32 to vector<8x128xf32>
    %87 = arith.maximumf %85, %86 : vector<8x128xf32>
    %c7 = arith.constant 7 : index
    %c0_40 = arith.constant 0 : index
    %88 = memref.load %arg2[%c7, %c0_40] : memref<10x2xf32, #tpu.memory_space<smem>>
    %89 = vector.broadcast %88 : f32 to vector<8x128xf32>
    %90 = arith.mulf %1, %89 : vector<8x128xf32>
    %c7_41 = arith.constant 7 : index
    %c1_42 = arith.constant 1 : index
    %91 = memref.load %arg2[%c7_41, %c1_42] : memref<10x2xf32, #tpu.memory_space<smem>>
    %92 = vector.broadcast %91 : f32 to vector<8x128xf32>
    %93 = arith.mulf %3, %92 : vector<8x128xf32>
    %94 = arith.addf %90, %93 : vector<8x128xf32>
    %c7_43 = arith.constant 7 : index
    %95 = memref.load %arg3[%c7_43] : memref<10xf32, #tpu.memory_space<smem>>
    %96 = vector.broadcast %95 : f32 to vector<8x128xf32>
    %97 = arith.addf %94, %96 : vector<8x128xf32>
    %cst_44 = arith.constant 0.000000e+00 : f32
    %98 = vector.broadcast %cst_44 : f32 to vector<8x128xf32>
    %99 = arith.maximumf %97, %98 : vector<8x128xf32>
    %c8 = arith.constant 8 : index
    %c0_45 = arith.constant 0 : index
    %100 = memref.load %arg2[%c8, %c0_45] : memref<10x2xf32, #tpu.memory_space<smem>>
    %101 = vector.broadcast %100 : f32 to vector<8x128xf32>
    %102 = arith.mulf %1, %101 : vector<8x128xf32>
    %c8_46 = arith.constant 8 : index
    %c1_47 = arith.constant 1 : index
    %103 = memref.load %arg2[%c8_46, %c1_47] : memref<10x2xf32, #tpu.memory_space<smem>>
    %104 = vector.broadcast %103 : f32 to vector<8x128xf32>
    %105 = arith.mulf %3, %104 : vector<8x128xf32>
    %106 = arith.addf %102, %105 : vector<8x128xf32>
    %c8_48 = arith.constant 8 : index
    %107 = memref.load %arg3[%c8_48] : memref<10xf32, #tpu.memory_space<smem>>
    %108 = vector.broadcast %107 : f32 to vector<8x128xf32>
    %109 = arith.addf %106, %108 : vector<8x128xf32>
    %cst_49 = arith.constant 0.000000e+00 : f32
    %110 = vector.broadcast %cst_49 : f32 to vector<8x128xf32>
    %111 = arith.maximumf %109, %110 : vector<8x128xf32>
    %c9 = arith.constant 9 : index
    %c0_50 = arith.constant 0 : index
    %112 = memref.load %arg2[%c9, %c0_50] : memref<10x2xf32, #tpu.memory_space<smem>>
    %113 = vector.broadcast %112 : f32 to vector<8x128xf32>
    %114 = arith.mulf %1, %113 : vector<8x128xf32>
    %c9_51 = arith.constant 9 : index
    %c1_52 = arith.constant 1 : index
    %115 = memref.load %arg2[%c9_51, %c1_52] : memref<10x2xf32, #tpu.memory_space<smem>>
    %116 = vector.broadcast %115 : f32 to vector<8x128xf32>
    %117 = arith.mulf %3, %116 : vector<8x128xf32>
    %118 = arith.addf %114, %117 : vector<8x128xf32>
    %c9_53 = arith.constant 9 : index
    %119 = memref.load %arg3[%c9_53] : memref<10xf32, #tpu.memory_space<smem>>
    %120 = vector.broadcast %119 : f32 to vector<8x128xf32>
    %121 = arith.addf %118, %120 : vector<8x128xf32>
    %cst_54 = arith.constant 0.000000e+00 : f32
    %122 = vector.broadcast %cst_54 : f32 to vector<8x128xf32>
    %123 = arith.maximumf %121, %122 : vector<8x128xf32>
    %c0_55 = arith.constant 0 : index
    %c0_56 = arith.constant 0 : index
    %124 = memref.load %arg4[%c0_55, %c0_56] : memref<10x10xf32, #tpu.memory_space<smem>>
    %125 = vector.broadcast %124 : f32 to vector<8x128xf32>
    %126 = arith.mulf %15, %125 : vector<8x128xf32>
    %c0_57 = arith.constant 0 : index
    %c1_58 = arith.constant 1 : index
    %127 = memref.load %arg4[%c0_57, %c1_58] : memref<10x10xf32, #tpu.memory_space<smem>>
    %128 = vector.broadcast %127 : f32 to vector<8x128xf32>
    %129 = arith.mulf %27, %128 : vector<8x128xf32>
    %130 = arith.addf %126, %129 : vector<8x128xf32>
    %c0_59 = arith.constant 0 : index
    %c2_60 = arith.constant 2 : index
    %131 = memref.load %arg4[%c0_59, %c2_60] : memref<10x10xf32, #tpu.memory_space<smem>>
    %132 = vector.broadcast %131 : f32 to vector<8x128xf32>
    %133 = arith.mulf %39, %132 : vector<8x128xf32>
    %134 = arith.addf %130, %133 : vector<8x128xf32>
    %c0_61 = arith.constant 0 : index
    %c3_62 = arith.constant 3 : index
    %135 = memref.load %arg4[%c0_61, %c3_62] : memref<10x10xf32, #tpu.memory_space<smem>>
    %136 = vector.broadcast %135 : f32 to vector<8x128xf32>
    %137 = arith.mulf %51, %136 : vector<8x128xf32>
    %138 = arith.addf %134, %137 : vector<8x128xf32>
    %c0_63 = arith.constant 0 : index
    %c4_64 = arith.constant 4 : index
    %139 = memref.load %arg4[%c0_63, %c4_64] : memref<10x10xf32, #tpu.memory_space<smem>>
    %140 = vector.broadcast %139 : f32 to vector<8x128xf32>
    %141 = arith.mulf %63, %140 : vector<8x128xf32>
    %142 = arith.addf %138, %141 : vector<8x128xf32>
    %c0_65 = arith.constant 0 : index
    %c5_66 = arith.constant 5 : index
    %143 = memref.load %arg4[%c0_65, %c5_66] : memref<10x10xf32, #tpu.memory_space<smem>>
    %144 = vector.broadcast %143 : f32 to vector<8x128xf32>
    %145 = arith.mulf %75, %144 : vector<8x128xf32>
    %146 = arith.addf %142, %145 : vector<8x128xf32>
    %c0_67 = arith.constant 0 : index
    %c6_68 = arith.constant 6 : index
    %147 = memref.load %arg4[%c0_67, %c6_68] : memref<10x10xf32, #tpu.memory_space<smem>>
    %148 = vector.broadcast %147 : f32 to vector<8x128xf32>
    %149 = arith.mulf %87, %148 : vector<8x128xf32>
    %150 = arith.addf %146, %149 : vector<8x128xf32>
    %c0_69 = arith.constant 0 : index
    %c7_70 = arith.constant 7 : index
    %151 = memref.load %arg4[%c0_69, %c7_70] : memref<10x10xf32, #tpu.memory_space<smem>>
    %152 = vector.broadcast %151 : f32 to vector<8x128xf32>
    %153 = arith.mulf %99, %152 : vector<8x128xf32>
    %154 = arith.addf %150, %153 : vector<8x128xf32>
    %c0_71 = arith.constant 0 : index
    %c8_72 = arith.constant 8 : index
    %155 = memref.load %arg4[%c0_71, %c8_72] : memref<10x10xf32, #tpu.memory_space<smem>>
    %156 = vector.broadcast %155 : f32 to vector<8x128xf32>
    %157 = arith.mulf %111, %156 : vector<8x128xf32>
    %158 = arith.addf %154, %157 : vector<8x128xf32>
    %c0_73 = arith.constant 0 : index
    %c9_74 = arith.constant 9 : index
    %159 = memref.load %arg4[%c0_73, %c9_74] : memref<10x10xf32, #tpu.memory_space<smem>>
    %160 = vector.broadcast %159 : f32 to vector<8x128xf32>
    %161 = arith.mulf %123, %160 : vector<8x128xf32>
    %162 = arith.addf %158, %161 : vector<8x128xf32>
    %c0_75 = arith.constant 0 : index
    %163 = memref.load %arg5[%c0_75] : memref<10xf32, #tpu.memory_space<smem>>
    %164 = vector.broadcast %163 : f32 to vector<8x128xf32>
    %165 = arith.addf %162, %164 : vector<8x128xf32>
    %cst_76 = arith.constant 0.000000e+00 : f32
    %166 = vector.broadcast %cst_76 : f32 to vector<8x128xf32>
    %167 = arith.maximumf %165, %166 : vector<8x128xf32>
    %c1_77 = arith.constant 1 : index
    %c0_78 = arith.constant 0 : index
    %168 = memref.load %arg4[%c1_77, %c0_78] : memref<10x10xf32, #tpu.memory_space<smem>>
    %169 = vector.broadcast %168 : f32 to vector<8x128xf32>
    %170 = arith.mulf %15, %169 : vector<8x128xf32>
    %c1_79 = arith.constant 1 : index
    %c1_80 = arith.constant 1 : index
    %171 = memref.load %arg4[%c1_79, %c1_80] : memref<10x10xf32, #tpu.memory_space<smem>>
    %172 = vector.broadcast %171 : f32 to vector<8x128xf32>
    %173 = arith.mulf %27, %172 : vector<8x128xf32>
    %174 = arith.addf %170, %173 : vector<8x128xf32>
    %c1_81 = arith.constant 1 : index
    %c2_82 = arith.constant 2 : index
    %175 = memref.load %arg4[%c1_81, %c2_82] : memref<10x10xf32, #tpu.memory_space<smem>>
    %176 = vector.broadcast %175 : f32 to vector<8x128xf32>
    %177 = arith.mulf %39, %176 : vector<8x128xf32>
    %178 = arith.addf %174, %177 : vector<8x128xf32>
    %c1_83 = arith.constant 1 : index
    %c3_84 = arith.constant 3 : index
    %179 = memref.load %arg4[%c1_83, %c3_84] : memref<10x10xf32, #tpu.memory_space<smem>>
    %180 = vector.broadcast %179 : f32 to vector<8x128xf32>
    %181 = arith.mulf %51, %180 : vector<8x128xf32>
    %182 = arith.addf %178, %181 : vector<8x128xf32>
    %c1_85 = arith.constant 1 : index
    %c4_86 = arith.constant 4 : index
    %183 = memref.load %arg4[%c1_85, %c4_86] : memref<10x10xf32, #tpu.memory_space<smem>>
    %184 = vector.broadcast %183 : f32 to vector<8x128xf32>
    %185 = arith.mulf %63, %184 : vector<8x128xf32>
    %186 = arith.addf %182, %185 : vector<8x128xf32>
    %c1_87 = arith.constant 1 : index
    %c5_88 = arith.constant 5 : index
    %187 = memref.load %arg4[%c1_87, %c5_88] : memref<10x10xf32, #tpu.memory_space<smem>>
    %188 = vector.broadcast %187 : f32 to vector<8x128xf32>
    %189 = arith.mulf %75, %188 : vector<8x128xf32>
    %190 = arith.addf %186, %189 : vector<8x128xf32>
    %c1_89 = arith.constant 1 : index
    %c6_90 = arith.constant 6 : index
    %191 = memref.load %arg4[%c1_89, %c6_90] : memref<10x10xf32, #tpu.memory_space<smem>>
    %192 = vector.broadcast %191 : f32 to vector<8x128xf32>
    %193 = arith.mulf %87, %192 : vector<8x128xf32>
    %194 = arith.addf %190, %193 : vector<8x128xf32>
    %c1_91 = arith.constant 1 : index
    %c7_92 = arith.constant 7 : index
    %195 = memref.load %arg4[%c1_91, %c7_92] : memref<10x10xf32, #tpu.memory_space<smem>>
    %196 = vector.broadcast %195 : f32 to vector<8x128xf32>
    %197 = arith.mulf %99, %196 : vector<8x128xf32>
    %198 = arith.addf %194, %197 : vector<8x128xf32>
    %c1_93 = arith.constant 1 : index
    %c8_94 = arith.constant 8 : index
    %199 = memref.load %arg4[%c1_93, %c8_94] : memref<10x10xf32, #tpu.memory_space<smem>>
    %200 = vector.broadcast %199 : f32 to vector<8x128xf32>
    %201 = arith.mulf %111, %200 : vector<8x128xf32>
    %202 = arith.addf %198, %201 : vector<8x128xf32>
    %c1_95 = arith.constant 1 : index
    %c9_96 = arith.constant 9 : index
    %203 = memref.load %arg4[%c1_95, %c9_96] : memref<10x10xf32, #tpu.memory_space<smem>>
    %204 = vector.broadcast %203 : f32 to vector<8x128xf32>
    %205 = arith.mulf %123, %204 : vector<8x128xf32>
    %206 = arith.addf %202, %205 : vector<8x128xf32>
    %c1_97 = arith.constant 1 : index
    %207 = memref.load %arg5[%c1_97] : memref<10xf32, #tpu.memory_space<smem>>
    %208 = vector.broadcast %207 : f32 to vector<8x128xf32>
    %209 = arith.addf %206, %208 : vector<8x128xf32>
    %cst_98 = arith.constant 0.000000e+00 : f32
    %210 = vector.broadcast %cst_98 : f32 to vector<8x128xf32>
    %211 = arith.maximumf %209, %210 : vector<8x128xf32>
    %c2_99 = arith.constant 2 : index
    %c0_100 = arith.constant 0 : index
    %212 = memref.load %arg4[%c2_99, %c0_100] : memref<10x10xf32, #tpu.memory_space<smem>>
    %213 = vector.broadcast %212 : f32 to vector<8x128xf32>
    %214 = arith.mulf %15, %213 : vector<8x128xf32>
    %c2_101 = arith.constant 2 : index
    %c1_102 = arith.constant 1 : index
    %215 = memref.load %arg4[%c2_101, %c1_102] : memref<10x10xf32, #tpu.memory_space<smem>>
    %216 = vector.broadcast %215 : f32 to vector<8x128xf32>
    %217 = arith.mulf %27, %216 : vector<8x128xf32>
    %218 = arith.addf %214, %217 : vector<8x128xf32>
    %c2_103 = arith.constant 2 : index
    %c2_104 = arith.constant 2 : index
    %219 = memref.load %arg4[%c2_103, %c2_104] : memref<10x10xf32, #tpu.memory_space<smem>>
    %220 = vector.broadcast %219 : f32 to vector<8x128xf32>
    %221 = arith.mulf %39, %220 : vector<8x128xf32>
    %222 = arith.addf %218, %221 : vector<8x128xf32>
    %c2_105 = arith.constant 2 : index
    %c3_106 = arith.constant 3 : index
    %223 = memref.load %arg4[%c2_105, %c3_106] : memref<10x10xf32, #tpu.memory_space<smem>>
    %224 = vector.broadcast %223 : f32 to vector<8x128xf32>
    %225 = arith.mulf %51, %224 : vector<8x128xf32>
    %226 = arith.addf %222, %225 : vector<8x128xf32>
    %c2_107 = arith.constant 2 : index
    %c4_108 = arith.constant 4 : index
    %227 = memref.load %arg4[%c2_107, %c4_108] : memref<10x10xf32, #tpu.memory_space<smem>>
    %228 = vector.broadcast %227 : f32 to vector<8x128xf32>
    %229 = arith.mulf %63, %228 : vector<8x128xf32>
    %230 = arith.addf %226, %229 : vector<8x128xf32>
    %c2_109 = arith.constant 2 : index
    %c5_110 = arith.constant 5 : index
    %231 = memref.load %arg4[%c2_109, %c5_110] : memref<10x10xf32, #tpu.memory_space<smem>>
    %232 = vector.broadcast %231 : f32 to vector<8x128xf32>
    %233 = arith.mulf %75, %232 : vector<8x128xf32>
    %234 = arith.addf %230, %233 : vector<8x128xf32>
    %c2_111 = arith.constant 2 : index
    %c6_112 = arith.constant 6 : index
    %235 = memref.load %arg4[%c2_111, %c6_112] : memref<10x10xf32, #tpu.memory_space<smem>>
    %236 = vector.broadcast %235 : f32 to vector<8x128xf32>
    %237 = arith.mulf %87, %236 : vector<8x128xf32>
    %238 = arith.addf %234, %237 : vector<8x128xf32>
    %c2_113 = arith.constant 2 : index
    %c7_114 = arith.constant 7 : index
    %239 = memref.load %arg4[%c2_113, %c7_114] : memref<10x10xf32, #tpu.memory_space<smem>>
    %240 = vector.broadcast %239 : f32 to vector<8x128xf32>
    %241 = arith.mulf %99, %240 : vector<8x128xf32>
    %242 = arith.addf %238, %241 : vector<8x128xf32>
    %c2_115 = arith.constant 2 : index
    %c8_116 = arith.constant 8 : index
    %243 = memref.load %arg4[%c2_115, %c8_116] : memref<10x10xf32, #tpu.memory_space<smem>>
    %244 = vector.broadcast %243 : f32 to vector<8x128xf32>
    %245 = arith.mulf %111, %244 : vector<8x128xf32>
    %246 = arith.addf %242, %245 : vector<8x128xf32>
    %c2_117 = arith.constant 2 : index
    %c9_118 = arith.constant 9 : index
    %247 = memref.load %arg4[%c2_117, %c9_118] : memref<10x10xf32, #tpu.memory_space<smem>>
    %248 = vector.broadcast %247 : f32 to vector<8x128xf32>
    %249 = arith.mulf %123, %248 : vector<8x128xf32>
    %250 = arith.addf %246, %249 : vector<8x128xf32>
    %c2_119 = arith.constant 2 : index
    %251 = memref.load %arg5[%c2_119] : memref<10xf32, #tpu.memory_space<smem>>
    %252 = vector.broadcast %251 : f32 to vector<8x128xf32>
    %253 = arith.addf %250, %252 : vector<8x128xf32>
    %cst_120 = arith.constant 0.000000e+00 : f32
    %254 = vector.broadcast %cst_120 : f32 to vector<8x128xf32>
    %255 = arith.maximumf %253, %254 : vector<8x128xf32>
    %c3_121 = arith.constant 3 : index
    %c0_122 = arith.constant 0 : index
    %256 = memref.load %arg4[%c3_121, %c0_122] : memref<10x10xf32, #tpu.memory_space<smem>>
    %257 = vector.broadcast %256 : f32 to vector<8x128xf32>
    %258 = arith.mulf %15, %257 : vector<8x128xf32>
    %c3_123 = arith.constant 3 : index
    %c1_124 = arith.constant 1 : index
    %259 = memref.load %arg4[%c3_123, %c1_124] : memref<10x10xf32, #tpu.memory_space<smem>>
    %260 = vector.broadcast %259 : f32 to vector<8x128xf32>
    %261 = arith.mulf %27, %260 : vector<8x128xf32>
    %262 = arith.addf %258, %261 : vector<8x128xf32>
    %c3_125 = arith.constant 3 : index
    %c2_126 = arith.constant 2 : index
    %263 = memref.load %arg4[%c3_125, %c2_126] : memref<10x10xf32, #tpu.memory_space<smem>>
    %264 = vector.broadcast %263 : f32 to vector<8x128xf32>
    %265 = arith.mulf %39, %264 : vector<8x128xf32>
    %266 = arith.addf %262, %265 : vector<8x128xf32>
    %c3_127 = arith.constant 3 : index
    %c3_128 = arith.constant 3 : index
    %267 = memref.load %arg4[%c3_127, %c3_128] : memref<10x10xf32, #tpu.memory_space<smem>>
    %268 = vector.broadcast %267 : f32 to vector<8x128xf32>
    %269 = arith.mulf %51, %268 : vector<8x128xf32>
    %270 = arith.addf %266, %269 : vector<8x128xf32>
    %c3_129 = arith.constant 3 : index
    %c4_130 = arith.constant 4 : index
    %271 = memref.load %arg4[%c3_129, %c4_130] : memref<10x10xf32, #tpu.memory_space<smem>>
    %272 = vector.broadcast %271 : f32 to vector<8x128xf32>
    %273 = arith.mulf %63, %272 : vector<8x128xf32>
    %274 = arith.addf %270, %273 : vector<8x128xf32>
    %c3_131 = arith.constant 3 : index
    %c5_132 = arith.constant 5 : index
    %275 = memref.load %arg4[%c3_131, %c5_132] : memref<10x10xf32, #tpu.memory_space<smem>>
    %276 = vector.broadcast %275 : f32 to vector<8x128xf32>
    %277 = arith.mulf %75, %276 : vector<8x128xf32>
    %278 = arith.addf %274, %277 : vector<8x128xf32>
    %c3_133 = arith.constant 3 : index
    %c6_134 = arith.constant 6 : index
    %279 = memref.load %arg4[%c3_133, %c6_134] : memref<10x10xf32, #tpu.memory_space<smem>>
    %280 = vector.broadcast %279 : f32 to vector<8x128xf32>
    %281 = arith.mulf %87, %280 : vector<8x128xf32>
    %282 = arith.addf %278, %281 : vector<8x128xf32>
    %c3_135 = arith.constant 3 : index
    %c7_136 = arith.constant 7 : index
    %283 = memref.load %arg4[%c3_135, %c7_136] : memref<10x10xf32, #tpu.memory_space<smem>>
    %284 = vector.broadcast %283 : f32 to vector<8x128xf32>
    %285 = arith.mulf %99, %284 : vector<8x128xf32>
    %286 = arith.addf %282, %285 : vector<8x128xf32>
    %c3_137 = arith.constant 3 : index
    %c8_138 = arith.constant 8 : index
    %287 = memref.load %arg4[%c3_137, %c8_138] : memref<10x10xf32, #tpu.memory_space<smem>>
    %288 = vector.broadcast %287 : f32 to vector<8x128xf32>
    %289 = arith.mulf %111, %288 : vector<8x128xf32>
    %290 = arith.addf %286, %289 : vector<8x128xf32>
    %c3_139 = arith.constant 3 : index
    %c9_140 = arith.constant 9 : index
    %291 = memref.load %arg4[%c3_139, %c9_140] : memref<10x10xf32, #tpu.memory_space<smem>>
    %292 = vector.broadcast %291 : f32 to vector<8x128xf32>
    %293 = arith.mulf %123, %292 : vector<8x128xf32>
    %294 = arith.addf %290, %293 : vector<8x128xf32>
    %c3_141 = arith.constant 3 : index
    %295 = memref.load %arg5[%c3_141] : memref<10xf32, #tpu.memory_space<smem>>
    %296 = vector.broadcast %295 : f32 to vector<8x128xf32>
    %297 = arith.addf %294, %296 : vector<8x128xf32>
    %cst_142 = arith.constant 0.000000e+00 : f32
    %298 = vector.broadcast %cst_142 : f32 to vector<8x128xf32>
    %299 = arith.maximumf %297, %298 : vector<8x128xf32>
    %c4_143 = arith.constant 4 : index
    %c0_144 = arith.constant 0 : index
    %300 = memref.load %arg4[%c4_143, %c0_144] : memref<10x10xf32, #tpu.memory_space<smem>>
    %301 = vector.broadcast %300 : f32 to vector<8x128xf32>
    %302 = arith.mulf %15, %301 : vector<8x128xf32>
    %c4_145 = arith.constant 4 : index
    %c1_146 = arith.constant 1 : index
    %303 = memref.load %arg4[%c4_145, %c1_146] : memref<10x10xf32, #tpu.memory_space<smem>>
    %304 = vector.broadcast %303 : f32 to vector<8x128xf32>
    %305 = arith.mulf %27, %304 : vector<8x128xf32>
    %306 = arith.addf %302, %305 : vector<8x128xf32>
    %c4_147 = arith.constant 4 : index
    %c2_148 = arith.constant 2 : index
    %307 = memref.load %arg4[%c4_147, %c2_148] : memref<10x10xf32, #tpu.memory_space<smem>>
    %308 = vector.broadcast %307 : f32 to vector<8x128xf32>
    %309 = arith.mulf %39, %308 : vector<8x128xf32>
    %310 = arith.addf %306, %309 : vector<8x128xf32>
    %c4_149 = arith.constant 4 : index
    %c3_150 = arith.constant 3 : index
    %311 = memref.load %arg4[%c4_149, %c3_150] : memref<10x10xf32, #tpu.memory_space<smem>>
    %312 = vector.broadcast %311 : f32 to vector<8x128xf32>
    %313 = arith.mulf %51, %312 : vector<8x128xf32>
    %314 = arith.addf %310, %313 : vector<8x128xf32>
    %c4_151 = arith.constant 4 : index
    %c4_152 = arith.constant 4 : index
    %315 = memref.load %arg4[%c4_151, %c4_152] : memref<10x10xf32, #tpu.memory_space<smem>>
    %316 = vector.broadcast %315 : f32 to vector<8x128xf32>
    %317 = arith.mulf %63, %316 : vector<8x128xf32>
    %318 = arith.addf %314, %317 : vector<8x128xf32>
    %c4_153 = arith.constant 4 : index
    %c5_154 = arith.constant 5 : index
    %319 = memref.load %arg4[%c4_153, %c5_154] : memref<10x10xf32, #tpu.memory_space<smem>>
    %320 = vector.broadcast %319 : f32 to vector<8x128xf32>
    %321 = arith.mulf %75, %320 : vector<8x128xf32>
    %322 = arith.addf %318, %321 : vector<8x128xf32>
    %c4_155 = arith.constant 4 : index
    %c6_156 = arith.constant 6 : index
    %323 = memref.load %arg4[%c4_155, %c6_156] : memref<10x10xf32, #tpu.memory_space<smem>>
    %324 = vector.broadcast %323 : f32 to vector<8x128xf32>
    %325 = arith.mulf %87, %324 : vector<8x128xf32>
    %326 = arith.addf %322, %325 : vector<8x128xf32>
    %c4_157 = arith.constant 4 : index
    %c7_158 = arith.constant 7 : index
    %327 = memref.load %arg4[%c4_157, %c7_158] : memref<10x10xf32, #tpu.memory_space<smem>>
    %328 = vector.broadcast %327 : f32 to vector<8x128xf32>
    %329 = arith.mulf %99, %328 : vector<8x128xf32>
    %330 = arith.addf %326, %329 : vector<8x128xf32>
    %c4_159 = arith.constant 4 : index
    %c8_160 = arith.constant 8 : index
    %331 = memref.load %arg4[%c4_159, %c8_160] : memref<10x10xf32, #tpu.memory_space<smem>>
    %332 = vector.broadcast %331 : f32 to vector<8x128xf32>
    %333 = arith.mulf %111, %332 : vector<8x128xf32>
    %334 = arith.addf %330, %333 : vector<8x128xf32>
    %c4_161 = arith.constant 4 : index
    %c9_162 = arith.constant 9 : index
    %335 = memref.load %arg4[%c4_161, %c9_162] : memref<10x10xf32, #tpu.memory_space<smem>>
    %336 = vector.broadcast %335 : f32 to vector<8x128xf32>
    %337 = arith.mulf %123, %336 : vector<8x128xf32>
    %338 = arith.addf %334, %337 : vector<8x128xf32>
    %c4_163 = arith.constant 4 : index
    %339 = memref.load %arg5[%c4_163] : memref<10xf32, #tpu.memory_space<smem>>
    %340 = vector.broadcast %339 : f32 to vector<8x128xf32>
    %341 = arith.addf %338, %340 : vector<8x128xf32>
    %cst_164 = arith.constant 0.000000e+00 : f32
    %342 = vector.broadcast %cst_164 : f32 to vector<8x128xf32>
    %343 = arith.maximumf %341, %342 : vector<8x128xf32>
    %c5_165 = arith.constant 5 : index
    %c0_166 = arith.constant 0 : index
    %344 = memref.load %arg4[%c5_165, %c0_166] : memref<10x10xf32, #tpu.memory_space<smem>>
    %345 = vector.broadcast %344 : f32 to vector<8x128xf32>
    %346 = arith.mulf %15, %345 : vector<8x128xf32>
    %c5_167 = arith.constant 5 : index
    %c1_168 = arith.constant 1 : index
    %347 = memref.load %arg4[%c5_167, %c1_168] : memref<10x10xf32, #tpu.memory_space<smem>>
    %348 = vector.broadcast %347 : f32 to vector<8x128xf32>
    %349 = arith.mulf %27, %348 : vector<8x128xf32>
    %350 = arith.addf %346, %349 : vector<8x128xf32>
    %c5_169 = arith.constant 5 : index
    %c2_170 = arith.constant 2 : index
    %351 = memref.load %arg4[%c5_169, %c2_170] : memref<10x10xf32, #tpu.memory_space<smem>>
    %352 = vector.broadcast %351 : f32 to vector<8x128xf32>
    %353 = arith.mulf %39, %352 : vector<8x128xf32>
    %354 = arith.addf %350, %353 : vector<8x128xf32>
    %c5_171 = arith.constant 5 : index
    %c3_172 = arith.constant 3 : index
    %355 = memref.load %arg4[%c5_171, %c3_172] : memref<10x10xf32, #tpu.memory_space<smem>>
    %356 = vector.broadcast %355 : f32 to vector<8x128xf32>
    %357 = arith.mulf %51, %356 : vector<8x128xf32>
    %358 = arith.addf %354, %357 : vector<8x128xf32>
    %c5_173 = arith.constant 5 : index
    %c4_174 = arith.constant 4 : index
    %359 = memref.load %arg4[%c5_173, %c4_174] : memref<10x10xf32, #tpu.memory_space<smem>>
    %360 = vector.broadcast %359 : f32 to vector<8x128xf32>
    %361 = arith.mulf %63, %360 : vector<8x128xf32>
    %362 = arith.addf %358, %361 : vector<8x128xf32>
    %c5_175 = arith.constant 5 : index
    %c5_176 = arith.constant 5 : index
    %363 = memref.load %arg4[%c5_175, %c5_176] : memref<10x10xf32, #tpu.memory_space<smem>>
    %364 = vector.broadcast %363 : f32 to vector<8x128xf32>
    %365 = arith.mulf %75, %364 : vector<8x128xf32>
    %366 = arith.addf %362, %365 : vector<8x128xf32>
    %c5_177 = arith.constant 5 : index
    %c6_178 = arith.constant 6 : index
    %367 = memref.load %arg4[%c5_177, %c6_178] : memref<10x10xf32, #tpu.memory_space<smem>>
    %368 = vector.broadcast %367 : f32 to vector<8x128xf32>
    %369 = arith.mulf %87, %368 : vector<8x128xf32>
    %370 = arith.addf %366, %369 : vector<8x128xf32>
    %c5_179 = arith.constant 5 : index
    %c7_180 = arith.constant 7 : index
    %371 = memref.load %arg4[%c5_179, %c7_180] : memref<10x10xf32, #tpu.memory_space<smem>>
    %372 = vector.broadcast %371 : f32 to vector<8x128xf32>
    %373 = arith.mulf %99, %372 : vector<8x128xf32>
    %374 = arith.addf %370, %373 : vector<8x128xf32>
    %c5_181 = arith.constant 5 : index
    %c8_182 = arith.constant 8 : index
    %375 = memref.load %arg4[%c5_181, %c8_182] : memref<10x10xf32, #tpu.memory_space<smem>>
    %376 = vector.broadcast %375 : f32 to vector<8x128xf32>
    %377 = arith.mulf %111, %376 : vector<8x128xf32>
    %378 = arith.addf %374, %377 : vector<8x128xf32>
    %c5_183 = arith.constant 5 : index
    %c9_184 = arith.constant 9 : index
    %379 = memref.load %arg4[%c5_183, %c9_184] : memref<10x10xf32, #tpu.memory_space<smem>>
    %380 = vector.broadcast %379 : f32 to vector<8x128xf32>
    %381 = arith.mulf %123, %380 : vector<8x128xf32>
    %382 = arith.addf %378, %381 : vector<8x128xf32>
    %c5_185 = arith.constant 5 : index
    %383 = memref.load %arg5[%c5_185] : memref<10xf32, #tpu.memory_space<smem>>
    %384 = vector.broadcast %383 : f32 to vector<8x128xf32>
    %385 = arith.addf %382, %384 : vector<8x128xf32>
    %cst_186 = arith.constant 0.000000e+00 : f32
    %386 = vector.broadcast %cst_186 : f32 to vector<8x128xf32>
    %387 = arith.maximumf %385, %386 : vector<8x128xf32>
    %c6_187 = arith.constant 6 : index
    %c0_188 = arith.constant 0 : index
    %388 = memref.load %arg4[%c6_187, %c0_188] : memref<10x10xf32, #tpu.memory_space<smem>>
    %389 = vector.broadcast %388 : f32 to vector<8x128xf32>
    %390 = arith.mulf %15, %389 : vector<8x128xf32>
    %c6_189 = arith.constant 6 : index
    %c1_190 = arith.constant 1 : index
    %391 = memref.load %arg4[%c6_189, %c1_190] : memref<10x10xf32, #tpu.memory_space<smem>>
    %392 = vector.broadcast %391 : f32 to vector<8x128xf32>
    %393 = arith.mulf %27, %392 : vector<8x128xf32>
    %394 = arith.addf %390, %393 : vector<8x128xf32>
    %c6_191 = arith.constant 6 : index
    %c2_192 = arith.constant 2 : index
    %395 = memref.load %arg4[%c6_191, %c2_192] : memref<10x10xf32, #tpu.memory_space<smem>>
    %396 = vector.broadcast %395 : f32 to vector<8x128xf32>
    %397 = arith.mulf %39, %396 : vector<8x128xf32>
    %398 = arith.addf %394, %397 : vector<8x128xf32>
    %c6_193 = arith.constant 6 : index
    %c3_194 = arith.constant 3 : index
    %399 = memref.load %arg4[%c6_193, %c3_194] : memref<10x10xf32, #tpu.memory_space<smem>>
    %400 = vector.broadcast %399 : f32 to vector<8x128xf32>
    %401 = arith.mulf %51, %400 : vector<8x128xf32>
    %402 = arith.addf %398, %401 : vector<8x128xf32>
    %c6_195 = arith.constant 6 : index
    %c4_196 = arith.constant 4 : index
    %403 = memref.load %arg4[%c6_195, %c4_196] : memref<10x10xf32, #tpu.memory_space<smem>>
    %404 = vector.broadcast %403 : f32 to vector<8x128xf32>
    %405 = arith.mulf %63, %404 : vector<8x128xf32>
    %406 = arith.addf %402, %405 : vector<8x128xf32>
    %c6_197 = arith.constant 6 : index
    %c5_198 = arith.constant 5 : index
    %407 = memref.load %arg4[%c6_197, %c5_198] : memref<10x10xf32, #tpu.memory_space<smem>>
    %408 = vector.broadcast %407 : f32 to vector<8x128xf32>
    %409 = arith.mulf %75, %408 : vector<8x128xf32>
    %410 = arith.addf %406, %409 : vector<8x128xf32>
    %c6_199 = arith.constant 6 : index
    %c6_200 = arith.constant 6 : index
    %411 = memref.load %arg4[%c6_199, %c6_200] : memref<10x10xf32, #tpu.memory_space<smem>>
    %412 = vector.broadcast %411 : f32 to vector<8x128xf32>
    %413 = arith.mulf %87, %412 : vector<8x128xf32>
    %414 = arith.addf %410, %413 : vector<8x128xf32>
    %c6_201 = arith.constant 6 : index
    %c7_202 = arith.constant 7 : index
    %415 = memref.load %arg4[%c6_201, %c7_202] : memref<10x10xf32, #tpu.memory_space<smem>>
    %416 = vector.broadcast %415 : f32 to vector<8x128xf32>
    %417 = arith.mulf %99, %416 : vector<8x128xf32>
    %418 = arith.addf %414, %417 : vector<8x128xf32>
    %c6_203 = arith.constant 6 : index
    %c8_204 = arith.constant 8 : index
    %419 = memref.load %arg4[%c6_203, %c8_204] : memref<10x10xf32, #tpu.memory_space<smem>>
    %420 = vector.broadcast %419 : f32 to vector<8x128xf32>
    %421 = arith.mulf %111, %420 : vector<8x128xf32>
    %422 = arith.addf %418, %421 : vector<8x128xf32>
    %c6_205 = arith.constant 6 : index
    %c9_206 = arith.constant 9 : index
    %423 = memref.load %arg4[%c6_205, %c9_206] : memref<10x10xf32, #tpu.memory_space<smem>>
    %424 = vector.broadcast %423 : f32 to vector<8x128xf32>
    %425 = arith.mulf %123, %424 : vector<8x128xf32>
    %426 = arith.addf %422, %425 : vector<8x128xf32>
    %c6_207 = arith.constant 6 : index
    %427 = memref.load %arg5[%c6_207] : memref<10xf32, #tpu.memory_space<smem>>
    %428 = vector.broadcast %427 : f32 to vector<8x128xf32>
    %429 = arith.addf %426, %428 : vector<8x128xf32>
    %cst_208 = arith.constant 0.000000e+00 : f32
    %430 = vector.broadcast %cst_208 : f32 to vector<8x128xf32>
    %431 = arith.maximumf %429, %430 : vector<8x128xf32>
    %c7_209 = arith.constant 7 : index
    %c0_210 = arith.constant 0 : index
    %432 = memref.load %arg4[%c7_209, %c0_210] : memref<10x10xf32, #tpu.memory_space<smem>>
    %433 = vector.broadcast %432 : f32 to vector<8x128xf32>
    %434 = arith.mulf %15, %433 : vector<8x128xf32>
    %c7_211 = arith.constant 7 : index
    %c1_212 = arith.constant 1 : index
    %435 = memref.load %arg4[%c7_211, %c1_212] : memref<10x10xf32, #tpu.memory_space<smem>>
    %436 = vector.broadcast %435 : f32 to vector<8x128xf32>
    %437 = arith.mulf %27, %436 : vector<8x128xf32>
    %438 = arith.addf %434, %437 : vector<8x128xf32>
    %c7_213 = arith.constant 7 : index
    %c2_214 = arith.constant 2 : index
    %439 = memref.load %arg4[%c7_213, %c2_214] : memref<10x10xf32, #tpu.memory_space<smem>>
    %440 = vector.broadcast %439 : f32 to vector<8x128xf32>
    %441 = arith.mulf %39, %440 : vector<8x128xf32>
    %442 = arith.addf %438, %441 : vector<8x128xf32>
    %c7_215 = arith.constant 7 : index
    %c3_216 = arith.constant 3 : index
    %443 = memref.load %arg4[%c7_215, %c3_216] : memref<10x10xf32, #tpu.memory_space<smem>>
    %444 = vector.broadcast %443 : f32 to vector<8x128xf32>
    %445 = arith.mulf %51, %444 : vector<8x128xf32>
    %446 = arith.addf %442, %445 : vector<8x128xf32>
    %c7_217 = arith.constant 7 : index
    %c4_218 = arith.constant 4 : index
    %447 = memref.load %arg4[%c7_217, %c4_218] : memref<10x10xf32, #tpu.memory_space<smem>>
    %448 = vector.broadcast %447 : f32 to vector<8x128xf32>
    %449 = arith.mulf %63, %448 : vector<8x128xf32>
    %450 = arith.addf %446, %449 : vector<8x128xf32>
    %c7_219 = arith.constant 7 : index
    %c5_220 = arith.constant 5 : index
    %451 = memref.load %arg4[%c7_219, %c5_220] : memref<10x10xf32, #tpu.memory_space<smem>>
    %452 = vector.broadcast %451 : f32 to vector<8x128xf32>
    %453 = arith.mulf %75, %452 : vector<8x128xf32>
    %454 = arith.addf %450, %453 : vector<8x128xf32>
    %c7_221 = arith.constant 7 : index
    %c6_222 = arith.constant 6 : index
    %455 = memref.load %arg4[%c7_221, %c6_222] : memref<10x10xf32, #tpu.memory_space<smem>>
    %456 = vector.broadcast %455 : f32 to vector<8x128xf32>
    %457 = arith.mulf %87, %456 : vector<8x128xf32>
    %458 = arith.addf %454, %457 : vector<8x128xf32>
    %c7_223 = arith.constant 7 : index
    %c7_224 = arith.constant 7 : index
    %459 = memref.load %arg4[%c7_223, %c7_224] : memref<10x10xf32, #tpu.memory_space<smem>>
    %460 = vector.broadcast %459 : f32 to vector<8x128xf32>
    %461 = arith.mulf %99, %460 : vector<8x128xf32>
    %462 = arith.addf %458, %461 : vector<8x128xf32>
    %c7_225 = arith.constant 7 : index
    %c8_226 = arith.constant 8 : index
    %463 = memref.load %arg4[%c7_225, %c8_226] : memref<10x10xf32, #tpu.memory_space<smem>>
    %464 = vector.broadcast %463 : f32 to vector<8x128xf32>
    %465 = arith.mulf %111, %464 : vector<8x128xf32>
    %466 = arith.addf %462, %465 : vector<8x128xf32>
    %c7_227 = arith.constant 7 : index
    %c9_228 = arith.constant 9 : index
    %467 = memref.load %arg4[%c7_227, %c9_228] : memref<10x10xf32, #tpu.memory_space<smem>>
    %468 = vector.broadcast %467 : f32 to vector<8x128xf32>
    %469 = arith.mulf %123, %468 : vector<8x128xf32>
    %470 = arith.addf %466, %469 : vector<8x128xf32>
    %c7_229 = arith.constant 7 : index
    %471 = memref.load %arg5[%c7_229] : memref<10xf32, #tpu.memory_space<smem>>
    %472 = vector.broadcast %471 : f32 to vector<8x128xf32>
    %473 = arith.addf %470, %472 : vector<8x128xf32>
    %cst_230 = arith.constant 0.000000e+00 : f32
    %474 = vector.broadcast %cst_230 : f32 to vector<8x128xf32>
    %475 = arith.maximumf %473, %474 : vector<8x128xf32>
    %c8_231 = arith.constant 8 : index
    %c0_232 = arith.constant 0 : index
    %476 = memref.load %arg4[%c8_231, %c0_232] : memref<10x10xf32, #tpu.memory_space<smem>>
    %477 = vector.broadcast %476 : f32 to vector<8x128xf32>
    %478 = arith.mulf %15, %477 : vector<8x128xf32>
    %c8_233 = arith.constant 8 : index
    %c1_234 = arith.constant 1 : index
    %479 = memref.load %arg4[%c8_233, %c1_234] : memref<10x10xf32, #tpu.memory_space<smem>>
    %480 = vector.broadcast %479 : f32 to vector<8x128xf32>
    %481 = arith.mulf %27, %480 : vector<8x128xf32>
    %482 = arith.addf %478, %481 : vector<8x128xf32>
    %c8_235 = arith.constant 8 : index
    %c2_236 = arith.constant 2 : index
    %483 = memref.load %arg4[%c8_235, %c2_236] : memref<10x10xf32, #tpu.memory_space<smem>>
    %484 = vector.broadcast %483 : f32 to vector<8x128xf32>
    %485 = arith.mulf %39, %484 : vector<8x128xf32>
    %486 = arith.addf %482, %485 : vector<8x128xf32>
    %c8_237 = arith.constant 8 : index
    %c3_238 = arith.constant 3 : index
    %487 = memref.load %arg4[%c8_237, %c3_238] : memref<10x10xf32, #tpu.memory_space<smem>>
    %488 = vector.broadcast %487 : f32 to vector<8x128xf32>
    %489 = arith.mulf %51, %488 : vector<8x128xf32>
    %490 = arith.addf %486, %489 : vector<8x128xf32>
    %c8_239 = arith.constant 8 : index
    %c4_240 = arith.constant 4 : index
    %491 = memref.load %arg4[%c8_239, %c4_240] : memref<10x10xf32, #tpu.memory_space<smem>>
    %492 = vector.broadcast %491 : f32 to vector<8x128xf32>
    %493 = arith.mulf %63, %492 : vector<8x128xf32>
    %494 = arith.addf %490, %493 : vector<8x128xf32>
    %c8_241 = arith.constant 8 : index
    %c5_242 = arith.constant 5 : index
    %495 = memref.load %arg4[%c8_241, %c5_242] : memref<10x10xf32, #tpu.memory_space<smem>>
    %496 = vector.broadcast %495 : f32 to vector<8x128xf32>
    %497 = arith.mulf %75, %496 : vector<8x128xf32>
    %498 = arith.addf %494, %497 : vector<8x128xf32>
    %c8_243 = arith.constant 8 : index
    %c6_244 = arith.constant 6 : index
    %499 = memref.load %arg4[%c8_243, %c6_244] : memref<10x10xf32, #tpu.memory_space<smem>>
    %500 = vector.broadcast %499 : f32 to vector<8x128xf32>
    %501 = arith.mulf %87, %500 : vector<8x128xf32>
    %502 = arith.addf %498, %501 : vector<8x128xf32>
    %c8_245 = arith.constant 8 : index
    %c7_246 = arith.constant 7 : index
    %503 = memref.load %arg4[%c8_245, %c7_246] : memref<10x10xf32, #tpu.memory_space<smem>>
    %504 = vector.broadcast %503 : f32 to vector<8x128xf32>
    %505 = arith.mulf %99, %504 : vector<8x128xf32>
    %506 = arith.addf %502, %505 : vector<8x128xf32>
    %c8_247 = arith.constant 8 : index
    %c8_248 = arith.constant 8 : index
    %507 = memref.load %arg4[%c8_247, %c8_248] : memref<10x10xf32, #tpu.memory_space<smem>>
    %508 = vector.broadcast %507 : f32 to vector<8x128xf32>
    %509 = arith.mulf %111, %508 : vector<8x128xf32>
    %510 = arith.addf %506, %509 : vector<8x128xf32>
    %c8_249 = arith.constant 8 : index
    %c9_250 = arith.constant 9 : index
    %511 = memref.load %arg4[%c8_249, %c9_250] : memref<10x10xf32, #tpu.memory_space<smem>>
    %512 = vector.broadcast %511 : f32 to vector<8x128xf32>
    %513 = arith.mulf %123, %512 : vector<8x128xf32>
    %514 = arith.addf %510, %513 : vector<8x128xf32>
    %c8_251 = arith.constant 8 : index
    %515 = memref.load %arg5[%c8_251] : memref<10xf32, #tpu.memory_space<smem>>
    %516 = vector.broadcast %515 : f32 to vector<8x128xf32>
    %517 = arith.addf %514, %516 : vector<8x128xf32>
    %cst_252 = arith.constant 0.000000e+00 : f32
    %518 = vector.broadcast %cst_252 : f32 to vector<8x128xf32>
    %519 = arith.maximumf %517, %518 : vector<8x128xf32>
    %c9_253 = arith.constant 9 : index
    %c0_254 = arith.constant 0 : index
    %520 = memref.load %arg4[%c9_253, %c0_254] : memref<10x10xf32, #tpu.memory_space<smem>>
    %521 = vector.broadcast %520 : f32 to vector<8x128xf32>
    %522 = arith.mulf %15, %521 : vector<8x128xf32>
    %c9_255 = arith.constant 9 : index
    %c1_256 = arith.constant 1 : index
    %523 = memref.load %arg4[%c9_255, %c1_256] : memref<10x10xf32, #tpu.memory_space<smem>>
    %524 = vector.broadcast %523 : f32 to vector<8x128xf32>
    %525 = arith.mulf %27, %524 : vector<8x128xf32>
    %526 = arith.addf %522, %525 : vector<8x128xf32>
    %c9_257 = arith.constant 9 : index
    %c2_258 = arith.constant 2 : index
    %527 = memref.load %arg4[%c9_257, %c2_258] : memref<10x10xf32, #tpu.memory_space<smem>>
    %528 = vector.broadcast %527 : f32 to vector<8x128xf32>
    %529 = arith.mulf %39, %528 : vector<8x128xf32>
    %530 = arith.addf %526, %529 : vector<8x128xf32>
    %c9_259 = arith.constant 9 : index
    %c3_260 = arith.constant 3 : index
    %531 = memref.load %arg4[%c9_259, %c3_260] : memref<10x10xf32, #tpu.memory_space<smem>>
    %532 = vector.broadcast %531 : f32 to vector<8x128xf32>
    %533 = arith.mulf %51, %532 : vector<8x128xf32>
    %534 = arith.addf %530, %533 : vector<8x128xf32>
    %c9_261 = arith.constant 9 : index
    %c4_262 = arith.constant 4 : index
    %535 = memref.load %arg4[%c9_261, %c4_262] : memref<10x10xf32, #tpu.memory_space<smem>>
    %536 = vector.broadcast %535 : f32 to vector<8x128xf32>
    %537 = arith.mulf %63, %536 : vector<8x128xf32>
    %538 = arith.addf %534, %537 : vector<8x128xf32>
    %c9_263 = arith.constant 9 : index
    %c5_264 = arith.constant 5 : index
    %539 = memref.load %arg4[%c9_263, %c5_264] : memref<10x10xf32, #tpu.memory_space<smem>>
    %540 = vector.broadcast %539 : f32 to vector<8x128xf32>
    %541 = arith.mulf %75, %540 : vector<8x128xf32>
    %542 = arith.addf %538, %541 : vector<8x128xf32>
    %c9_265 = arith.constant 9 : index
    %c6_266 = arith.constant 6 : index
    %543 = memref.load %arg4[%c9_265, %c6_266] : memref<10x10xf32, #tpu.memory_space<smem>>
    %544 = vector.broadcast %543 : f32 to vector<8x128xf32>
    %545 = arith.mulf %87, %544 : vector<8x128xf32>
    %546 = arith.addf %542, %545 : vector<8x128xf32>
    %c9_267 = arith.constant 9 : index
    %c7_268 = arith.constant 7 : index
    %547 = memref.load %arg4[%c9_267, %c7_268] : memref<10x10xf32, #tpu.memory_space<smem>>
    %548 = vector.broadcast %547 : f32 to vector<8x128xf32>
    %549 = arith.mulf %99, %548 : vector<8x128xf32>
    %550 = arith.addf %546, %549 : vector<8x128xf32>
    %c9_269 = arith.constant 9 : index
    %c8_270 = arith.constant 8 : index
    %551 = memref.load %arg4[%c9_269, %c8_270] : memref<10x10xf32, #tpu.memory_space<smem>>
    %552 = vector.broadcast %551 : f32 to vector<8x128xf32>
    %553 = arith.mulf %111, %552 : vector<8x128xf32>
    %554 = arith.addf %550, %553 : vector<8x128xf32>
    %c9_271 = arith.constant 9 : index
    %c9_272 = arith.constant 9 : index
    %555 = memref.load %arg4[%c9_271, %c9_272] : memref<10x10xf32, #tpu.memory_space<smem>>
    %556 = vector.broadcast %555 : f32 to vector<8x128xf32>
    %557 = arith.mulf %123, %556 : vector<8x128xf32>
    %558 = arith.addf %554, %557 : vector<8x128xf32>
    %c9_273 = arith.constant 9 : index
    %559 = memref.load %arg5[%c9_273] : memref<10xf32, #tpu.memory_space<smem>>
    %560 = vector.broadcast %559 : f32 to vector<8x128xf32>
    %561 = arith.addf %558, %560 : vector<8x128xf32>
    %cst_274 = arith.constant 0.000000e+00 : f32
    %562 = vector.broadcast %cst_274 : f32 to vector<8x128xf32>
    %563 = arith.maximumf %561, %562 : vector<8x128xf32>
    %c0_275 = arith.constant 0 : index
    %c0_276 = arith.constant 0 : index
    %564 = memref.load %arg6[%c0_275, %c0_276] : memref<2x10xf32, #tpu.memory_space<smem>>
    %565 = vector.broadcast %564 : f32 to vector<8x128xf32>
    %566 = arith.mulf %167, %565 : vector<8x128xf32>
    %c0_277 = arith.constant 0 : index
    %c1_278 = arith.constant 1 : index
    %567 = memref.load %arg6[%c0_277, %c1_278] : memref<2x10xf32, #tpu.memory_space<smem>>
    %568 = vector.broadcast %567 : f32 to vector<8x128xf32>
    %569 = arith.mulf %211, %568 : vector<8x128xf32>
    %570 = arith.addf %566, %569 : vector<8x128xf32>
    %c0_279 = arith.constant 0 : index
    %c2_280 = arith.constant 2 : index
    %571 = memref.load %arg6[%c0_279, %c2_280] : memref<2x10xf32, #tpu.memory_space<smem>>
    %572 = vector.broadcast %571 : f32 to vector<8x128xf32>
    %573 = arith.mulf %255, %572 : vector<8x128xf32>
    %574 = arith.addf %570, %573 : vector<8x128xf32>
    %c0_281 = arith.constant 0 : index
    %c3_282 = arith.constant 3 : index
    %575 = memref.load %arg6[%c0_281, %c3_282] : memref<2x10xf32, #tpu.memory_space<smem>>
    %576 = vector.broadcast %575 : f32 to vector<8x128xf32>
    %577 = arith.mulf %299, %576 : vector<8x128xf32>
    %578 = arith.addf %574, %577 : vector<8x128xf32>
    %c0_283 = arith.constant 0 : index
    %c4_284 = arith.constant 4 : index
    %579 = memref.load %arg6[%c0_283, %c4_284] : memref<2x10xf32, #tpu.memory_space<smem>>
    %580 = vector.broadcast %579 : f32 to vector<8x128xf32>
    %581 = arith.mulf %343, %580 : vector<8x128xf32>
    %582 = arith.addf %578, %581 : vector<8x128xf32>
    %c0_285 = arith.constant 0 : index
    %c5_286 = arith.constant 5 : index
    %583 = memref.load %arg6[%c0_285, %c5_286] : memref<2x10xf32, #tpu.memory_space<smem>>
    %584 = vector.broadcast %583 : f32 to vector<8x128xf32>
    %585 = arith.mulf %387, %584 : vector<8x128xf32>
    %586 = arith.addf %582, %585 : vector<8x128xf32>
    %c0_287 = arith.constant 0 : index
    %c6_288 = arith.constant 6 : index
    %587 = memref.load %arg6[%c0_287, %c6_288] : memref<2x10xf32, #tpu.memory_space<smem>>
    %588 = vector.broadcast %587 : f32 to vector<8x128xf32>
    %589 = arith.mulf %431, %588 : vector<8x128xf32>
    %590 = arith.addf %586, %589 : vector<8x128xf32>
    %c0_289 = arith.constant 0 : index
    %c7_290 = arith.constant 7 : index
    %591 = memref.load %arg6[%c0_289, %c7_290] : memref<2x10xf32, #tpu.memory_space<smem>>
    %592 = vector.broadcast %591 : f32 to vector<8x128xf32>
    %593 = arith.mulf %475, %592 : vector<8x128xf32>
    %594 = arith.addf %590, %593 : vector<8x128xf32>
    %c0_291 = arith.constant 0 : index
    %c8_292 = arith.constant 8 : index
    %595 = memref.load %arg6[%c0_291, %c8_292] : memref<2x10xf32, #tpu.memory_space<smem>>
    %596 = vector.broadcast %595 : f32 to vector<8x128xf32>
    %597 = arith.mulf %519, %596 : vector<8x128xf32>
    %598 = arith.addf %594, %597 : vector<8x128xf32>
    %c0_293 = arith.constant 0 : index
    %c9_294 = arith.constant 9 : index
    %599 = memref.load %arg6[%c0_293, %c9_294] : memref<2x10xf32, #tpu.memory_space<smem>>
    %600 = vector.broadcast %599 : f32 to vector<8x128xf32>
    %601 = arith.mulf %563, %600 : vector<8x128xf32>
    %602 = arith.addf %598, %601 : vector<8x128xf32>
    %c0_295 = arith.constant 0 : index
    %603 = memref.load %arg7[%c0_295] : memref<2xf32, #tpu.memory_space<smem>>
    %604 = vector.broadcast %603 : f32 to vector<8x128xf32>
    %605 = arith.addf %602, %604 : vector<8x128xf32>
    %c0_296 = arith.constant 0 : index
    %c0_297 = arith.constant 0 : index
    %c0_298 = arith.constant 0 : index
    %606 = vector.load %arg8[%c0_296, %c0_297, %c0_298] : memref<2x8x128xf32, #tpu.memory_space<vmem>>, vector<1x8x128xf32>
    %607 = vector.shape_cast %606 : vector<1x8x128xf32> to vector<8x128xf32>
    %608 = vector.shape_cast %605 : vector<8x128xf32> to vector<1x8x128xf32>
    tpu.vector_store %arg8[%c0_296, %c0_297, %c0_298], %608 {strides = array<i32>} : memref<2x8x128xf32, #tpu.memory_space<vmem>>, vector<1x8x128xf32>,
    %c1_299 = arith.constant 1 : index
    %c0_300 = arith.constant 0 : index
    %609 = memref.load %arg6[%c1_299, %c0_300] : memref<2x10xf32, #tpu.memory_space<smem>>
    %610 = vector.broadcast %609 : f32 to vector<8x128xf32>
    %611 = arith.mulf %167, %610 : vector<8x128xf32>
    %c1_301 = arith.constant 1 : index
    %c1_302 = arith.constant 1 : index
    %612 = memref.load %arg6[%c1_301, %c1_302] : memref<2x10xf32, #tpu.memory_space<smem>>
    %613 = vector.broadcast %612 : f32 to vector<8x128xf32>
    %614 = arith.mulf %211, %613 : vector<8x128xf32>
    %615 = arith.addf %611, %614 : vector<8x128xf32>
    %c1_303 = arith.constant 1 : index
    %c2_304 = arith.constant 2 : index
    %616 = memref.load %arg6[%c1_303, %c2_304] : memref<2x10xf32, #tpu.memory_space<smem>>
    %617 = vector.broadcast %616 : f32 to vector<8x128xf32>
    %618 = arith.mulf %255, %617 : vector<8x128xf32>
    %619 = arith.addf %615, %618 : vector<8x128xf32>
    %c1_305 = arith.constant 1 : index
    %c3_306 = arith.constant 3 : index
    %620 = memref.load %arg6[%c1_305, %c3_306] : memref<2x10xf32, #tpu.memory_space<smem>>
    %621 = vector.broadcast %620 : f32 to vector<8x128xf32>
    %622 = arith.mulf %299, %621 : vector<8x128xf32>
    %623 = arith.addf %619, %622 : vector<8x128xf32>
    %c1_307 = arith.constant 1 : index
    %c4_308 = arith.constant 4 : index
    %624 = memref.load %arg6[%c1_307, %c4_308] : memref<2x10xf32, #tpu.memory_space<smem>>
    %625 = vector.broadcast %624 : f32 to vector<8x128xf32>
    %626 = arith.mulf %343, %625 : vector<8x128xf32>
    %627 = arith.addf %623, %626 : vector<8x128xf32>
    %c1_309 = arith.constant 1 : index
    %c5_310 = arith.constant 5 : index
    %628 = memref.load %arg6[%c1_309, %c5_310] : memref<2x10xf32, #tpu.memory_space<smem>>
    %629 = vector.broadcast %628 : f32 to vector<8x128xf32>
    %630 = arith.mulf %387, %629 : vector<8x128xf32>
    %631 = arith.addf %627, %630 : vector<8x128xf32>
    %c1_311 = arith.constant 1 : index
    %c6_312 = arith.constant 6 : index
    %632 = memref.load %arg6[%c1_311, %c6_312] : memref<2x10xf32, #tpu.memory_space<smem>>
    %633 = vector.broadcast %632 : f32 to vector<8x128xf32>
    %634 = arith.mulf %431, %633 : vector<8x128xf32>
    %635 = arith.addf %631, %634 : vector<8x128xf32>
    %c1_313 = arith.constant 1 : index
    %c7_314 = arith.constant 7 : index
    %636 = memref.load %arg6[%c1_313, %c7_314] : memref<2x10xf32, #tpu.memory_space<smem>>
    %637 = vector.broadcast %636 : f32 to vector<8x128xf32>
    %638 = arith.mulf %475, %637 : vector<8x128xf32>
    %639 = arith.addf %635, %638 : vector<8x128xf32>
    %c1_315 = arith.constant 1 : index
    %c8_316 = arith.constant 8 : index
    %640 = memref.load %arg6[%c1_315, %c8_316] : memref<2x10xf32, #tpu.memory_space<smem>>
    %641 = vector.broadcast %640 : f32 to vector<8x128xf32>
    %642 = arith.mulf %519, %641 : vector<8x128xf32>
    %643 = arith.addf %639, %642 : vector<8x128xf32>
    %c1_317 = arith.constant 1 : index
    %c9_318 = arith.constant 9 : index
    %644 = memref.load %arg6[%c1_317, %c9_318] : memref<2x10xf32, #tpu.memory_space<smem>>
    %645 = vector.broadcast %644 : f32 to vector<8x128xf32>
    %646 = arith.mulf %563, %645 : vector<8x128xf32>
    %647 = arith.addf %643, %646 : vector<8x128xf32>
    %c1_319 = arith.constant 1 : index
    %648 = memref.load %arg7[%c1_319] : memref<2xf32, #tpu.memory_space<smem>>
    %649 = vector.broadcast %648 : f32 to vector<8x128xf32>
    %650 = arith.addf %647, %649 : vector<8x128xf32>
    %c1_320 = arith.constant 1 : index
    %c0_321 = arith.constant 0 : index
    %c0_322 = arith.constant 0 : index
    %651 = vector.load %arg8[%c1_320, %c0_321, %c0_322] : memref<2x8x128xf32, #tpu.memory_space<vmem>>, vector<1x8x128xf32>
    %652 = vector.shape_cast %651 : vector<1x8x128xf32> to vector<8x128xf32>
    %653 = vector.shape_cast %650 : vector<8x128xf32> to vector<1x8x128xf32>
    tpu.vector_store %arg8[%c1_320, %c0_321, %c0_322], %653 {strides = array<i32>} : memref<2x8x128xf32, #tpu.memory_space<vmem>>, vector<1x8x128xf32>,
    return
  }
  func.func @transform_0(%arg0: i32) -> (i32, i32, i32) {
    %c0_i32 = arith.constant 0 : i32
    %c0_i32_0 = arith.constant 0 : i32
    %c0_i32_1 = arith.constant 0 : i32
    return %c0_i32, %arg0, %c0_i32_0 : i32, i32, i32
  }
  func.func @transform_1(%arg0: i32) -> (i32, i32) {
    %c0_i32 = arith.constant 0 : i32
    %c0_i32_0 = arith.constant 0 : i32
    %c0_i32_1 = arith.constant 0 : i32
    return %c0_i32, %c0_i32_0 : i32, i32
  }
  func.func @transform_2(%arg0: i32) -> i32 {
    %c0_i32 = arith.constant 0 : i32
    %c0_i32_0 = arith.constant 0 : i32
    return %c0_i32 : i32
  }
  func.func @transform_3(%arg0: i32) -> (i32, i32) {
    %c0_i32 = arith.constant 0 : i32
    %c0_i32_0 = arith.constant 0 : i32
    %c0_i32_1 = arith.constant 0 : i32
    return %c0_i32, %c0_i32_0 : i32, i32
  }
  func.func @transform_4(%arg0: i32) -> i32 {
    %c0_i32 = arith.constant 0 : i32
    %c0_i32_0 = arith.constant 0 : i32
    return %c0_i32 : i32
  }
  func.func @transform_5(%arg0: i32) -> (i32, i32) {
    %c0_i32 = arith.constant 0 : i32
    %c0_i32_0 = arith.constant 0 : i32
    %c0_i32_1 = arith.constant 0 : i32
    return %c0_i32, %c0_i32_0 : i32, i32
  }
  func.func @transform_6(%arg0: i32) -> i32 {
    %c0_i32 = arith.constant 0 : i32
    %c0_i32_0 = arith.constant 0 : i32
    return %c0_i32 : i32
  }
  func.func @transform_7(%arg0: i32) -> (i32, i32, i32) {
    %c0_i32 = arith.constant 0 : i32
    %c0_i32_0 = arith.constant 0 : i32
    %c0_i32_1 = arith.constant 0 : i32
    return %c0_i32, %arg0, %c0_i32_0 : i32, i32, i32
  }
}

</mosaic_0001>

<llo_original>
// kernel: tpu_custom_call.1
$region0: #{tpu_custom_call.1}
  #allocation0 [shape = 'u32[]', space=smem, size = 0x4, offset = 0x4, fixed_abs, tag = 'smem constant byte address 0x4 - core index']
  #allocation1 [shape = 'u32[72,128]{1,0:T(1,128)}', space=vmem, size = 0x9000, scoped, tag = 'internal scratch']
  %s0 = inlined_call_operand.vmem [shape: f32[2,8,128], index: 0, kind: input, shape index: {}]
  %s1 = inlined_call_operand.vmem [shape: f32[10,2], index: 1, kind: input, shape index: {}]
  %s2 = inlined_call_operand.vmem [shape: f32[10], index: 2, kind: input, shape index: {}]
  %s3 = inlined_call_operand.hbm [shape: f32[10,10], index: 3, kind: input, shape index: {}]
  %s4 = inlined_call_operand.vmem [shape: f32[10], index: 4, kind: input, shape index: {}]
  %s5 = inlined_call_operand.vmem [shape: f32[2,10], index: 5, kind: input, shape index: {}]
  %s6 = inlined_call_operand.vmem [shape: f32[2], index: 6, kind: input, shape index: {}]
  %s7 = inlined_call_operand.hbm [shape: f32[2,8,128], index: 7, kind: output, shape index: {}]
  %s8 = sld [smem:[#allocation0]]
  $region62: #{tpu_custom_call.1} parent=0
    _
  %s10 = ssub.s32 1, %s8
  %s11 = scalar_select 0, %s10, %s8
  $region1: #{tpu_custom_call.1} parent=0
    #allocation2 [shape = 'u8[8192]{0}', space=smem, size = 0x2000, scoped, tag = 'input window, operand 1, single buffered']
    #allocation3 [shape = 's32[1]{0}', space=sflag, size = 0x4, scoped, tag = 'scoped memory for tpu_custom_call.1']
    #allocation4 [shape = 's32[1]{0}', space=sflag, size = 0x4, scoped, tag = 'scoped memory for tpu_custom_call.1']
    #allocation5 [shape = 's32[1]{0}', space=sflag, size = 0x4, scoped, tag = 'scoped memory for tpu_custom_call.1']
    #allocation6 [shape = 'u8[512]{0}', space=smem, size = 0x200, scoped, tag = 'input window, operand 2, single buffered']
    #allocation7 [shape = 's32[1]{0}', space=sflag, size = 0x4, scoped, tag = 'scoped memory for tpu_custom_call.1']
    #allocation8 [shape = 'u8[8192]{0}', space=smem, size = 0x2000, scoped, tag = 'input window, operand 3, single buffered']
    #allocation9 [shape = 'u8[512]{0}', space=smem, size = 0x200, scoped, tag = 'input window, operand 4, single buffered']
    #allocation10 [shape = 'u8[1024]{0}', space=smem, size = 0x400, scoped, tag = 'input window, operand 5, single buffered']
    #allocation11 [shape = 's32[1]{0}', space=sflag, size = 0x4, scoped, tag = 'scoped memory for tpu_custom_call.1']
    #allocation12 [shape = 'u8[512]{0}', space=smem, size = 0x200, scoped, tag = 'input window, operand 6, single buffered']
    #allocation13 [shape = 'u8[8192]{0}', space=vmem, size = 0x2000, scoped, tag = 'output window, operand 0, single buffered']
    %12 = vsyncpa [#allocation5], 0
    %13 = vsyncpa [#allocation7], 0
    %14 = vsyncpa [#allocation4], 0
    %15 = vsyncpa [#allocation11], 0
    %16 = vsyncpa [#allocation3], 0
    // Predicated region
    $region2: #{tpu_custom_call.1} parent=1 // pred_check
      _
    $region3: #{tpu_custom_call.1} parent=1 // pred_check_branch
      %18 = sbr.rel (0) target = $region5
    $region4: #{tpu_custom_call.1} parent=1 // pred_region
      _
    $region5: #{tpu_custom_call.1} parent=1 // pred_fallthru
      _
    // Predicated region
    $region6: #{tpu_custom_call.1} parent=1 // pred_check
      _
    $region7: #{tpu_custom_call.1} parent=1 // pred_check_branch
      %20 = sbr.rel (0) target = $region9
    $region8: #{tpu_custom_call.1} parent=1 // pred_region
      %22 = vsyncadd [#allocation5], 0
      %s23 = sshll.u32 %s1, 4
      %s24 = int_to_ptr.vmem [resolvable:$true] %s23
      %29 = dma.vmem_to_smem %s24, 256, [#allocation2], [#allocation5], 128, 128, 8
    $region9: #{tpu_custom_call.1} parent=1 // pred_fallthru
      _
    // Predicated region
    $region10: #{tpu_custom_call.1} parent=1 // pred_check
      _
    $region11: #{tpu_custom_call.1} parent=1 // pred_check_branch
      %31 = sbr.rel (0) target = $region13
    $region12: #{tpu_custom_call.1} parent=1 // pred_region
      %33 = vsyncadd [#allocation7], 0
      %s35 = sshll.u32 %s2, 4
      %s36 = int_to_ptr.vmem [resolvable:$true] %s35
      %38 = dma.vmem_to_smem %s36, 16, [#allocation6], [#allocation7]
    $region13: #{tpu_custom_call.1} parent=1 // pred_fallthru
      _
    // Predicated region
    $region14: #{tpu_custom_call.1} parent=1 // pred_check
      _
    $region15: #{tpu_custom_call.1} parent=1 // pred_check_branch
      %40 = sbr.rel (0) target = $region17
    $region16: #{tpu_custom_call.1} parent=1 // pred_region
      %42 = vsyncadd [#allocation4], 0
      %s43 = sshll.u32 %s3, 4
      %s44 = int_to_ptr.hbm [resolvable:$true] %s43
      %49 = dma.hbm_to_smem %s44, 256, [#allocation8], [#allocation4], 128, 128, 8
    $region17: #{tpu_custom_call.1} parent=1 // pred_fallthru
      _
    // Predicated region
    $region18: #{tpu_custom_call.1} parent=1 // pred_check
      _
    $region19: #{tpu_custom_call.1} parent=1 // pred_check_branch
      %51 = sbr.rel (0) target = $region21
    $region20: #{tpu_custom_call.1} parent=1 // pred_region
      %53 = vsyncadd [#allocation7], 0
      %s55 = sshll.u32 %s4, 4
      %s56 = int_to_ptr.vmem [resolvable:$true] %s55
      %58 = dma.vmem_to_smem %s56, 16, [#allocation9], [#allocation7]
    $region21: #{tpu_custom_call.1} parent=1 // pred_fallthru
      _
    // Predicated region
    $region22: #{tpu_custom_call.1} parent=1 // pred_check
      _
    $region23: #{tpu_custom_call.1} parent=1 // pred_check_branch
      %60 = sbr.rel (0) target = $region25
    $region24: #{tpu_custom_call.1} parent=1 // pred_region
      %62 = vsyncadd [#allocation11], 0
      %s64 = sshll.u32 %s5, 4
      %s65 = int_to_ptr.vmem [resolvable:$true] %s64
      %67 = dma.vmem_to_smem %s65, 32, [#allocation10], [#allocation11]
    $region25: #{tpu_custom_call.1} parent=1 // pred_fallthru
      _
    // Predicated region
    $region26: #{tpu_custom_call.1} parent=1 // pred_check
      _
    $region27: #{tpu_custom_call.1} parent=1 // pred_check_branch
      %69 = sbr.rel (0) target = $region29
    $region28: #{tpu_custom_call.1} parent=1 // pred_region
      %71 = vsyncadd [#allocation11], 0
      %s73 = sshll.u32 %s6, 4
      %s74 = int_to_ptr.vmem [resolvable:$true] %s73
      %76 = dma.vmem_to_smem %s74, 16, [#allocation12], [#allocation11]
    $region29: #{tpu_custom_call.1} parent=1 // pred_fallthru
      _
    // Predicated region
    $region30: #{tpu_custom_call.1} parent=1 // pred_check
      _
    $region31: #{tpu_custom_call.1} parent=1 // pred_check_branch
      %78 = sbr.rel (0) target = $region33
    $region32: #{tpu_custom_call.1} parent=1 // pred_region
      %80 = dma.done [#allocation5], 256
    $region33: #{tpu_custom_call.1} parent=1 // pred_fallthru
      _
    // Predicated region
    $region34: #{tpu_custom_call.1} parent=1 // pred_check
      _
    $region35: #{tpu_custom_call.1} parent=1 // pred_check_branch
      %82 = sbr.rel (0) target = $region37
    $region36: #{tpu_custom_call.1} parent=1 // pred_region
      %84 = dma.done [#allocation7], 16
    $region37: #{tpu_custom_call.1} parent=1 // pred_fallthru
      _
    // Predicated region
    $region38: #{tpu_custom_call.1} parent=1 // pred_check
      _
    $region39: #{tpu_custom_call.1} parent=1 // pred_check_branch
      %86 = sbr.rel (0) target = $region41
    $region40: #{tpu_custom_call.1} parent=1 // pred_region
      %88 = dma.done [#allocation4], 256
    $region41: #{tpu_custom_call.1} parent=1 // pred_fallthru
      _
    // Predicated region
    $region42: #{tpu_custom_call.1} parent=1 // pred_check
      _
    $region43: #{tpu_custom_call.1} parent=1 // pred_check_branch
      %90 = sbr.rel (0) target = $region45
    $region44: #{tpu_custom_call.1} parent=1 // pred_region
      %92 = dma.done [#allocation7], 16
    $region45: #{tpu_custom_call.1} parent=1 // pred_fallthru
      _
    // Predicated region
    $region46: #{tpu_custom_call.1} parent=1 // pred_check
      _
    $region47: #{tpu_custom_call.1} parent=1 // pred_check_branch
      %94 = sbr.rel (0) target = $region49
    $region48: #{tpu_custom_call.1} parent=1 // pred_region
      %96 = dma.done [#allocation11], 32
    $region49: #{tpu_custom_call.1} parent=1 // pred_fallthru
      _
    // Predicated region
    $region50: #{tpu_custom_call.1} parent=1 // pred_check
      _
    $region51: #{tpu_custom_call.1} parent=1 // pred_check_branch
      %98 = sbr.rel (0) target = $region53
    $region52: #{tpu_custom_call.1} parent=1 // pred_region
      %100 = dma.done [#allocation11], 16
    $region53: #{tpu_custom_call.1} parent=1 // pred_fallthru
      _
    %101 = sfence
    %v102 = vld [vmem:[%s0] sm:$0xff]
    %s103 = scalar_lea.vmem %s0, 8
    %v104 = vld [vmem:[%s103] sm:$0xff]
    %s105 = sld [smem:[#allocation2]]
    %v106 = vstv %s105
    %v107 = vmul.f32 %v102, %v106
    %s108 = sld [smem:[#allocation2 + $0x1]]
    %v109 = vstv %s108
    %v110 = vmul.f32 %v104, %v109
    %v111 = vadd.f32 %v107, %v110
    %s112 = sld [smem:[#allocation6]]
    %v113 = vstv %s112
    %v114 = vadd.f32 %v111, %v113
    %v115 = vmax.f32 %v114, 0.0
    %s116 = sld [smem:[#allocation2 + $0x80]]
    %v117 = vstv %s116
    %v118 = vmul.f32 %v102, %v117
    %s119 = sld [smem:[#allocation2 + $0x81]]
    %v120 = vstv %s119
    %v121 = vmul.f32 %v104, %v120
    %v122 = vadd.f32 %v118, %v121
    %s123 = sld [smem:[#allocation6 + $0x1]]
    %v124 = vstv %s123
    %v125 = vadd.f32 %v122, %v124
    %v126 = vmax.f32 %v125, 0.0
    %s127 = sld [smem:[#allocation2 + $0x100]]
    %v128 = vstv %s127
    %v129 = vmul.f32 %v102, %v128
    %s130 = sld [smem:[#allocation2 + $0x101]]
    %v131 = vstv %s130
    %v132 = vmul.f32 %v104, %v131
    %v133 = vadd.f32 %v129, %v132
    %s134 = sld [smem:[#allocation6 + $0x2]]
    %v135 = vstv %s134
    %v136 = vadd.f32 %v133, %v135
    %v137 = vmax.f32 %v136, 0.0
    %s138 = sld [smem:[#allocation2 + $0x180]]
    %v139 = vstv %s138
    %v140 = vmul.f32 %v102, %v139
    %s141 = sld [smem:[#allocation2 + $0x181]]
    %v142 = vstv %s141
    %v143 = vmul.f32 %v104, %v142
    %v144 = vadd.f32 %v140, %v143
    %s145 = sld [smem:[#allocation6 + $0x3]]
    %v146 = vstv %s145
    %v147 = vadd.f32 %v144, %v146
    %v148 = vmax.f32 %v147, 0.0
    %s149 = sld [smem:[#allocation2 + $0x200]]
    %v150 = vstv %s149
    %v151 = vmul.f32 %v102, %v150
    %s152 = sld [smem:[#allocation2 + $0x201]]
    %v153 = vstv %s152
    %v154 = vmul.f32 %v104, %v153
    %v155 = vadd.f32 %v151, %v154
    %s156 = sld [smem:[#allocation6 + $0x4]]
    %v157 = vstv %s156
    %v158 = vadd.f32 %v155, %v157
    %v159 = vmax.f32 %v158, 0.0
    %s160 = sld [smem:[#allocation2 + $0x280]]
    %v161 = vstv %s160
    %v162 = vmul.f32 %v102, %v161
    %s163 = sld [smem:[#allocation2 + $0x281]]
    %v164 = vstv %s163
    %v165 = vmul.f32 %v104, %v164
    %v166 = vadd.f32 %v162, %v165
    %s167 = sld [smem:[#allocation6 + $0x5]]
    %v168 = vstv %s167
    %v169 = vadd.f32 %v166, %v168
    %v170 = vmax.f32 %v169, 0.0
    %s171 = sld [smem:[#allocation2 + $0x300]]
    %v172 = vstv %s171
    %v173 = vmul.f32 %v102, %v172
    %s174 = sld [smem:[#allocation2 + $0x301]]
    %v175 = vstv %s174
    %v176 = vmul.f32 %v104, %v175
    %v177 = vadd.f32 %v173, %v176
    %s178 = sld [smem:[#allocation6 + $0x6]]
    %v179 = vstv %s178
    %v180 = vadd.f32 %v177, %v179
    %v181 = vmax.f32 %v180, 0.0
    %s182 = sld [smem:[#allocation2 + $0x380]]
    %v183 = vstv %s182
    %v184 = vmul.f32 %v102, %v183
    %s185 = sld [smem:[#allocation2 + $0x381]]
    %v186 = vstv %s185
    %v187 = vmul.f32 %v104, %v186
    %v188 = vadd.f32 %v184, %v187
    %s189 = sld [smem:[#allocation6 + $0x7]]
    %v190 = vstv %s189
    %v191 = vadd.f32 %v188, %v190
    %v192 = vmax.f32 %v191, 0.0
    %s193 = sld [smem:[#allocation2 + $0x400]]
    %v194 = vstv %s193
    %v195 = vmul.f32 %v102, %v194
    %s196 = sld [smem:[#allocation2 + $0x401]]
    %v197 = vstv %s196
    %v198 = vmul.f32 %v104, %v197
    %v199 = vadd.f32 %v195, %v198
    %s200 = sld [smem:[#allocation6 + $0x8]]
    %v201 = vstv %s200
    %v202 = vadd.f32 %v199, %v201
    %v203 = vmax.f32 %v202, 0.0
    %s204 = sld [smem:[#allocation2 + $0x480]]
    %v205 = vstv %s204
    %v206 = vmul.f32 %v102, %v205
    %s207 = sld [smem:[#allocation2 + $0x481]]
    %v208 = vstv %s207
    %v209 = vmul.f32 %v104, %v208
    %v210 = vadd.f32 %v206, %v209
    %s211 = sld [smem:[#allocation6 + $0x9]]
    %v212 = vstv %s211
    %v213 = vadd.f32 %v210, %v212
    %v214 = vmax.f32 %v213, 0.0
    %s215 = sld [smem:[#allocation8]]
    %v216 = vstv %s215
    %v217 = vmul.f32 %v115, %v216
    %s218 = sld [smem:[#allocation8 + $0x1]]
    %v219 = vstv %s218
    %v220 = vmul.f32 %v126, %v219
    %v221 = vadd.f32 %v217, %v220
    %s222 = sld [smem:[#allocation8 + $0x2]]
    %v223 = vstv %s222
    %v224 = vmul.f32 %v137, %v223
    %v225 = vadd.f32 %v221, %v224
    %s226 = sld [smem:[#allocation8 + $0x3]]
    %v227 = vstv %s226
    %v228 = vmul.f32 %v148, %v227
    %v229 = vadd.f32 %v225, %v228
    %s230 = sld [smem:[#allocation8 + $0x4]]
    %v231 = vstv %s230
    %v232 = vmul.f32 %v159, %v231
    %v233 = vadd.f32 %v229, %v232
    %s234 = sld [smem:[#allocation8 + $0x5]]
    %v235 = vstv %s234
    %v236 = vmul.f32 %v170, %v235
    %v237 = vadd.f32 %v233, %v236
    %s238 = sld [smem:[#allocation8 + $0x6]]
    %v239 = vstv %s238
    %v240 = vmul.f32 %v181, %v239
    %v241 = vadd.f32 %v237, %v240
    %s242 = sld [smem:[#allocation8 + $0x7]]
    %v243 = vstv %s242
    %v244 = vmul.f32 %v192, %v243
    %v245 = vadd.f32 %v241, %v244
    %s246 = sld [smem:[#allocation8 + $0x8]]
    %v247 = vstv %s246
    %v248 = vmul.f32 %v203, %v247
    %v249 = vadd.f32 %v245, %v248
    %s250 = sld [smem:[#allocation8 + $0x9]]
    %v251 = vstv %s250
    %v252 = vmul.f32 %v214, %v251
    %v253 = vadd.f32 %v249, %v252
    %s254 = sld [smem:[#allocation9]]
    %v255 = vstv %s254
    %v256 = vadd.f32 %v253, %v255
    %v257 = vmax.f32 %v256, 0.0
    %s258 = sld [smem:[#allocation8 + $0x80]]
    %v259 = vstv %s258
    %v260 = vmul.f32 %v115, %v259
    %s261 = sld [smem:[#allocation8 + $0x81]]
    %v262 = vstv %s261
    %v263 = vmul.f32 %v126, %v262
    %v264 = vadd.f32 %v260, %v263
    %s265 = sld [smem:[#allocation8 + $0x82]]
    %v266 = vstv %s265
    %v267 = vmul.f32 %v137, %v266
    %v268 = vadd.f32 %v264, %v267
    %s269 = sld [smem:[#allocation8 + $0x83]]
    %v270 = vstv %s269
    %v271 = vmul.f32 %v148, %v270
    %v272 = vadd.f32 %v268, %v271
    %s273 = sld [smem:[#allocation8 + $0x84]]
    %v274 = vstv %s273
    %v275 = vmul.f32 %v159, %v274
    %v276 = vadd.f32 %v272, %v275
    %s277 = sld [smem:[#allocation8 + $0x85]]
    %v278 = vstv %s277
    %v279 = vmul.f32 %v170, %v278
    %v280 = vadd.f32 %v276, %v279
    %s281 = sld [smem:[#allocation8 + $0x86]]
    %v282 = vstv %s281
    %v283 = vmul.f32 %v181, %v282
    %v284 = vadd.f32 %v280, %v283
    %s285 = sld [smem:[#allocation8 + $0x87]]
    %v286 = vstv %s285
    %v287 = vmul.f32 %v192, %v286
    %v288 = vadd.f32 %v284, %v287
    %s289 = sld [smem:[#allocation8 + $0x88]]
    %v290 = vstv %s289
    %v291 = vmul.f32 %v203, %v290
    %v292 = vadd.f32 %v288, %v291
    %s293 = sld [smem:[#allocation8 + $0x89]]
    %v294 = vstv %s293
    %v295 = vmul.f32 %v214, %v294
    %v296 = vadd.f32 %v292, %v295
    %s297 = sld [smem:[#allocation9 + $0x1]]
    %v298 = vstv %s297
    %v299 = vadd.f32 %v296, %v298
    %v300 = vmax.f32 %v299, 0.0
    %s301 = sld [smem:[#allocation8 + $0x100]]
    %v302 = vstv %s301
    %v303 = vmul.f32 %v115, %v302
    %s304 = sld [smem:[#allocation8 + $0x101]]
    %v305 = vstv %s304
    %v306 = vmul.f32 %v126, %v305
    %v307 = vadd.f32 %v303, %v306
    %s308 = sld [smem:[#allocation8 + $0x102]]
    %v309 = vstv %s308
    %v310 = vmul.f32 %v137, %v309
    %v311 = vadd.f32 %v307, %v310
    %s312 = sld [smem:[#allocation8 + $0x103]]
    %v313 = vstv %s312
    %v314 = vmul.f32 %v148, %v313
    %v315 = vadd.f32 %v311, %v314
    %s316 = sld [smem:[#allocation8 + $0x104]]
    %v317 = vstv %s316
    %v318 = vmul.f32 %v159, %v317
    %v319 = vadd.f32 %v315, %v318
    %s320 = sld [smem:[#allocation8 + $0x105]]
    %v321 = vstv %s320
    %v322 = vmul.f32 %v170, %v321
    %v323 = vadd.f32 %v319, %v322
    %s324 = sld [smem:[#allocation8 + $0x106]]
    %v325 = vstv %s324
    %v326 = vmul.f32 %v181, %v325
    %v327 = vadd.f32 %v323, %v326
    %s328 = sld [smem:[#allocation8 + $0x107]]
    %v329 = vstv %s328
    %v330 = vmul.f32 %v192, %v329
    %v331 = vadd.f32 %v327, %v330
    %s332 = sld [smem:[#allocation8 + $0x108]]
    %v333 = vstv %s332
    %v334 = vmul.f32 %v203, %v333
    %v335 = vadd.f32 %v331, %v334
    %s336 = sld [smem:[#allocation8 + $0x109]]
    %v337 = vstv %s336
    %v338 = vmul.f32 %v214, %v337
    %v339 = vadd.f32 %v335, %v338
    %s340 = sld [smem:[#allocation9 + $0x2]]
    %v341 = vstv %s340
    %v342 = vadd.f32 %v339, %v341
    %v343 = vmax.f32 %v342, 0.0
    %s344 = sld [smem:[#allocation8 + $0x180]]
    %v345 = vstv %s344
    %v346 = vmul.f32 %v115, %v345
    %s347 = sld [smem:[#allocation8 + $0x181]]
    %v348 = vstv %s347
    %v349 = vmul.f32 %v126, %v348
    %v350 = vadd.f32 %v346, %v349
    %s351 = sld [smem:[#allocation8 + $0x182]]
    %v352 = vstv %s351
    %v353 = vmul.f32 %v137, %v352
    %v354 = vadd.f32 %v350, %v353
    %s355 = sld [smem:[#allocation8 + $0x183]]
    %v356 = vstv %s355
    %v357 = vmul.f32 %v148, %v356
    %v358 = vadd.f32 %v354, %v357
    %s359 = sld [smem:[#allocation8 + $0x184]]
    %v360 = vstv %s359
    %v361 = vmul.f32 %v159, %v360
    %v362 = vadd.f32 %v358, %v361
    %s363 = sld [smem:[#allocation8 + $0x185]]
    %v364 = vstv %s363
    %v365 = vmul.f32 %v170, %v364
    %v366 = vadd.f32 %v362, %v365
    %s367 = sld [smem:[#allocation8 + $0x186]]
    %v368 = vstv %s367
    %v369 = vmul.f32 %v181, %v368
    %v370 = vadd.f32 %v366, %v369
    %s371 = sld [smem:[#allocation8 + $0x187]]
    %v372 = vstv %s371
    %v373 = vmul.f32 %v192, %v372
    %v374 = vadd.f32 %v370, %v373
    %s375 = sld [smem:[#allocation8 + $0x188]]
    %v376 = vstv %s375
    %v377 = vmul.f32 %v203, %v376
    %v378 = vadd.f32 %v374, %v377
    %s379 = sld [smem:[#allocation8 + $0x189]]
    %v380 = vstv %s379
    %v381 = vmul.f32 %v214, %v380
    %v382 = vadd.f32 %v378, %v381
    %s383 = sld [smem:[#allocation9 + $0x3]]
    %v384 = vstv %s383
    %v385 = vadd.f32 %v382, %v384
    %v386 = vmax.f32 %v385, 0.0
    %s387 = sld [smem:[#allocation8 + $0x200]]
    %v388 = vstv %s387
    %v389 = vmul.f32 %v115, %v388
    %s390 = sld [smem:[#allocation8 + $0x201]]
    %v391 = vstv %s390
    %v392 = vmul.f32 %v126, %v391
    %v393 = vadd.f32 %v389, %v392
    %s394 = sld [smem:[#allocation8 + $0x202]]
    %v395 = vstv %s394
    %v396 = vmul.f32 %v137, %v395
    %v397 = vadd.f32 %v393, %v396
    %s398 = sld [smem:[#allocation8 + $0x203]]
    %v399 = vstv %s398
    %v400 = vmul.f32 %v148, %v399
    %v401 = vadd.f32 %v397, %v400
    %s402 = sld [smem:[#allocation8 + $0x204]]
    %v403 = vstv %s402
    %v404 = vmul.f32 %v159, %v403
    %v405 = vadd.f32 %v401, %v404
    %s406 = sld [smem:[#allocation8 + $0x205]]
    %v407 = vstv %s406
    %v408 = vmul.f32 %v170, %v407
    %v409 = vadd.f32 %v405, %v408
    %s410 = sld [smem:[#allocation8 + $0x206]]
    %v411 = vstv %s410
    %v412 = vmul.f32 %v181, %v411
    %v413 = vadd.f32 %v409, %v412
    %s414 = sld [smem:[#allocation8 + $0x207]]
    %v415 = vstv %s414
    %v416 = vmul.f32 %v192, %v415
    %v417 = vadd.f32 %v413, %v416
    %s418 = sld [smem:[#allocation8 + $0x208]]
    %v419 = vstv %s418
    %v420 = vmul.f32 %v203, %v419
    %v421 = vadd.f32 %v417, %v420
    %s422 = sld [smem:[#allocation8 + $0x209]]
    %v423 = vstv %s422
    %v424 = vmul.f32 %v214, %v423
    %v425 = vadd.f32 %v421, %v424
    %s426 = sld [smem:[#allocation9 + $0x4]]
    %v427 = vstv %s426
    %v428 = vadd.f32 %v425, %v427
    %v429 = vmax.f32 %v428, 0.0
    %s430 = sld [smem:[#allocation8 + $0x280]]
    %v431 = vstv %s430
    %v432 = vmul.f32 %v115, %v431
    %s433 = sld [smem:[#allocation8 + $0x281]]
    %v434 = vstv %s433
    %v435 = vmul.f32 %v126, %v434
    %v436 = vadd.f32 %v432, %v435
    %s437 = sld [smem:[#allocation8 + $0x282]]
    %v438 = vstv %s437
    %v439 = vmul.f32 %v137, %v438
    %v440 = vadd.f32 %v436, %v439
    %s441 = sld [smem:[#allocation8 + $0x283]]
    %v442 = vstv %s441
    %v443 = vmul.f32 %v148, %v442
    %v444 = vadd.f32 %v440, %v443
    %s445 = sld [smem:[#allocation8 + $0x284]]
    %v446 = vstv %s445
    %v447 = vmul.f32 %v159, %v446
    %v448 = vadd.f32 %v444, %v447
    %s449 = sld [smem:[#allocation8 + $0x285]]
    %v450 = vstv %s449
    %v451 = vmul.f32 %v170, %v450
    %v452 = vadd.f32 %v448, %v451
    %s453 = sld [smem:[#allocation8 + $0x286]]
    %v454 = vstv %s453
    %v455 = vmul.f32 %v181, %v454
    %v456 = vadd.f32 %v452, %v455
    %s457 = sld [smem:[#allocation8 + $0x287]]
    %v458 = vstv %s457
    %v459 = vmul.f32 %v192, %v458
    %v460 = vadd.f32 %v456, %v459
    %s461 = sld [smem:[#allocation8 + $0x288]]
    %v462 = vstv %s461
    %v463 = vmul.f32 %v203, %v462
    %v464 = vadd.f32 %v460, %v463
    %s465 = sld [smem:[#allocation8 + $0x289]]
    %v466 = vstv %s465
    %v467 = vmul.f32 %v214, %v466
    %v468 = vadd.f32 %v464, %v467
    %s469 = sld [smem:[#allocation9 + $0x5]]
    %v470 = vstv %s469
    %v471 = vadd.f32 %v468, %v470
    %v472 = vmax.f32 %v471, 0.0
    %s473 = sld [smem:[#allocation8 + $0x300]]
    %v474 = vstv %s473
    %v475 = vmul.f32 %v115, %v474
    %s476 = sld [smem:[#allocation8 + $0x301]]
    %v477 = vstv %s476
    %v478 = vmul.f32 %v126, %v477
    %v479 = vadd.f32 %v475, %v478
    %s480 = sld [smem:[#allocation8 + $0x302]]
    %v481 = vstv %s480
    %v482 = vmul.f32 %v137, %v481
    %v483 = vadd.f32 %v479, %v482
    %s484 = sld [smem:[#allocation8 + $0x303]]
    %v485 = vstv %s484
    %v486 = vmul.f32 %v148, %v485
    %v487 = vadd.f32 %v483, %v486
    %s488 = sld [smem:[#allocation8 + $0x304]]
    %v489 = vstv %s488
    %v490 = vmul.f32 %v159, %v489
    %v491 = vadd.f32 %v487, %v490
    %s492 = sld [smem:[#allocation8 + $0x305]]
    %v493 = vstv %s492
    %v494 = vmul.f32 %v170, %v493
    %v495 = vadd.f32 %v491, %v494
    %s496 = sld [smem:[#allocation8 + $0x306]]
    %v497 = vstv %s496
    %v498 = vmul.f32 %v181, %v497
    %v499 = vadd.f32 %v495, %v498
    %s500 = sld [smem:[#allocation8 + $0x307]]
    %v501 = vstv %s500
    %v502 = vmul.f32 %v192, %v501
    %v503 = vadd.f32 %v499, %v502
    %s504 = sld [smem:[#allocation8 + $0x308]]
    %v505 = vstv %s504
    %v506 = vmul.f32 %v203, %v505
    %v507 = vadd.f32 %v503, %v506
    %s508 = sld [smem:[#allocation8 + $0x309]]
    %v509 = vstv %s508
    %v510 = vmul.f32 %v214, %v509
    %v511 = vadd.f32 %v507, %v510
    %s512 = sld [smem:[#allocation9 + $0x6]]
    %v513 = vstv %s512
    %v514 = vadd.f32 %v511, %v513
    %v515 = vmax.f32 %v514, 0.0
    %s516 = sld [smem:[#allocation8 + $0x380]]
    %v517 = vstv %s516
    %v518 = vmul.f32 %v115, %v517
    %s519 = sld [smem:[#allocation8 + $0x381]]
    %v520 = vstv %s519
    %v521 = vmul.f32 %v126, %v520
    %v522 = vadd.f32 %v518, %v521
    %s523 = sld [smem:[#allocation8 + $0x382]]
    %v524 = vstv %s523
    %v525 = vmul.f32 %v137, %v524
    %v526 = vadd.f32 %v522, %v525
    %s527 = sld [smem:[#allocation8 + $0x383]]
    %v528 = vstv %s527
    %v529 = vmul.f32 %v148, %v528
    %v530 = vadd.f32 %v526, %v529
    %s531 = sld [smem:[#allocation8 + $0x384]]
    %v532 = vstv %s531
    %v533 = vmul.f32 %v159, %v532
    %v534 = vadd.f32 %v530, %v533
    %s535 = sld [smem:[#allocation8 + $0x385]]
    %v536 = vstv %s535
    %v537 = vmul.f32 %v170, %v536
    %v538 = vadd.f32 %v534, %v537
    %s539 = sld [smem:[#allocation8 + $0x386]]
    %v540 = vstv %s539
    %v541 = vmul.f32 %v181, %v540
    %v542 = vadd.f32 %v538, %v541
    %s543 = sld [smem:[#allocation8 + $0x387]]
    %v544 = vstv %s543
    %v545 = vmul.f32 %v192, %v544
    %v546 = vadd.f32 %v542, %v545
    %s547 = sld [smem:[#allocation8 + $0x388]]
    %v548 = vstv %s547
    %v549 = vmul.f32 %v203, %v548
    %v550 = vadd.f32 %v546, %v549
    %s551 = sld [smem:[#allocation8 + $0x389]]
    %v552 = vstv %s551
    %v553 = vmul.f32 %v214, %v552
    %v554 = vadd.f32 %v550, %v553
    %s555 = sld [smem:[#allocation9 + $0x7]]
    %v556 = vstv %s555
    %v557 = vadd.f32 %v554, %v556
    %v558 = vmax.f32 %v557, 0.0
    %s559 = sld [smem:[#allocation8 + $0x400]]
    %v560 = vstv %s559
    %v561 = vmul.f32 %v115, %v560
    %s562 = sld [smem:[#allocation8 + $0x401]]
    %v563 = vstv %s562
    %v564 = vmul.f32 %v126, %v563
    %v565 = vadd.f32 %v561, %v564
    %s566 = sld [smem:[#allocation8 + $0x402]]
    %v567 = vstv %s566
    %v568 = vmul.f32 %v137, %v567
    %v569 = vadd.f32 %v565, %v568
    %s570 = sld [smem:[#allocation8 + $0x403]]
    %v571 = vstv %s570
    %v572 = vmul.f32 %v148, %v571
    %v573 = vadd.f32 %v569, %v572
    %s574 = sld [smem:[#allocation8 + $0x404]]
    %v575 = vstv %s574
    %v576 = vmul.f32 %v159, %v575
    %v577 = vadd.f32 %v573, %v576
    %s578 = sld [smem:[#allocation8 + $0x405]]
    %v579 = vstv %s578
    %v580 = vmul.f32 %v170, %v579
    %v581 = vadd.f32 %v577, %v580
    %s582 = sld [smem:[#allocation8 + $0x406]]
    %v583 = vstv %s582
    %v584 = vmul.f32 %v181, %v583
    %v585 = vadd.f32 %v581, %v584
    %s586 = sld [smem:[#allocation8 + $0x407]]
    %v587 = vstv %s586
    %v588 = vmul.f32 %v192, %v587
    %v589 = vadd.f32 %v585, %v588
    %s590 = sld [smem:[#allocation8 + $0x408]]
    %v591 = vstv %s590
    %v592 = vmul.f32 %v203, %v591
    %v593 = vadd.f32 %v589, %v592
    %s594 = sld [smem:[#allocation8 + $0x409]]
    %v595 = vstv %s594
    %v596 = vmul.f32 %v214, %v595
    %v597 = vadd.f32 %v593, %v596
    %s598 = sld [smem:[#allocation9 + $0x8]]
    %v599 = vstv %s598
    %v600 = vadd.f32 %v597, %v599
    %v601 = vmax.f32 %v600, 0.0
    %s602 = sld [smem:[#allocation8 + $0x480]]
    %v603 = vstv %s602
    %v604 = vmul.f32 %v115, %v603
    %s605 = sld [smem:[#allocation8 + $0x481]]
    %v606 = vstv %s605
    %v607 = vmul.f32 %v126, %v606
    %v608 = vadd.f32 %v604, %v607
    %s609 = sld [smem:[#allocation8 + $0x482]]
    %v610 = vstv %s609
    %v611 = vmul.f32 %v137, %v610
    %v612 = vadd.f32 %v608, %v611
    %s613 = sld [smem:[#allocation8 + $0x483]]
    %v614 = vstv %s613
    %v615 = vmul.f32 %v148, %v614
    %v616 = vadd.f32 %v612, %v615
    %s617 = sld [smem:[#allocation8 + $0x484]]
    %v618 = vstv %s617
    %v619 = vmul.f32 %v159, %v618
    %v620 = vadd.f32 %v616, %v619
    %s621 = sld [smem:[#allocation8 + $0x485]]
    %v622 = vstv %s621
    %v623 = vmul.f32 %v170, %v622
    %v624 = vadd.f32 %v620, %v623
    %s625 = sld [smem:[#allocation8 + $0x486]]
    %v626 = vstv %s625
    %v627 = vmul.f32 %v181, %v626
    %v628 = vadd.f32 %v624, %v627
    %s629 = sld [smem:[#allocation8 + $0x487]]
    %v630 = vstv %s629
    %v631 = vmul.f32 %v192, %v630
    %v632 = vadd.f32 %v628, %v631
    %s633 = sld [smem:[#allocation8 + $0x488]]
    %v634 = vstv %s633
    %v635 = vmul.f32 %v203, %v634
    %v636 = vadd.f32 %v632, %v635
    %s637 = sld [smem:[#allocation8 + $0x489]]
    %v638 = vstv %s637
    %v639 = vmul.f32 %v214, %v638
    %v640 = vadd.f32 %v636, %v639
    %s641 = sld [smem:[#allocation9 + $0x9]]
    %v642 = vstv %s641
    %v643 = vadd.f32 %v640, %v642
    %v644 = vmax.f32 %v643, 0.0
    %s645 = sld [smem:[#allocation10]]
    %v646 = vstv %s645
    %v647 = vmul.f32 %v257, %v646
    %s648 = sld [smem:[#allocation10 + $0x1]]
    %v649 = vstv %s648
    %v650 = vmul.f32 %v300, %v649
    %v651 = vadd.f32 %v647, %v650
    %s652 = sld [smem:[#allocation10 + $0x2]]
    %v653 = vstv %s652
    %v654 = vmul.f32 %v343, %v653
    %v655 = vadd.f32 %v651, %v654
    %s656 = sld [smem:[#allocation10 + $0x3]]
    %v657 = vstv %s656
    %v658 = vmul.f32 %v386, %v657
    %v659 = vadd.f32 %v655, %v658
    %s660 = sld [smem:[#allocation10 + $0x4]]
    %v661 = vstv %s660
    %v662 = vmul.f32 %v429, %v661
    %v663 = vadd.f32 %v659, %v662
    %s664 = sld [smem:[#allocation10 + $0x5]]
    %v665 = vstv %s664
    %v666 = vmul.f32 %v472, %v665
    %v667 = vadd.f32 %v663, %v666
    %s668 = sld [smem:[#allocation10 + $0x6]]
    %v669 = vstv %s668
    %v670 = vmul.f32 %v515, %v669
    %v671 = vadd.f32 %v667, %v670
    %s672 = sld [smem:[#allocation10 + $0x7]]
    %v673 = vstv %s672
    %v674 = vmul.f32 %v558, %v673
    %v675 = vadd.f32 %v671, %v674
    %s676 = sld [smem:[#allocation10 + $0x8]]
    %v677 = vstv %s676
    %v678 = vmul.f32 %v601, %v677
    %v679 = vadd.f32 %v675, %v678
    %s680 = sld [smem:[#allocation10 + $0x9]]
    %v681 = vstv %s680
    %v682 = vmul.f32 %v644, %v681
    %v683 = vadd.f32 %v679, %v682
    %s684 = sld [smem:[#allocation12]]
    %v685 = vstv %s684
    %v686 = vadd.f32 %v683, %v685
    %687 = vst [vmem:[#allocation13] sm:$0xff] %v686
    %s688 = sld [smem:[#allocation10 + $0x80]]
    %v689 = vstv %s688
    %v690 = vmul.f32 %v257, %v689
    %s691 = sld [smem:[#allocation10 + $0x81]]
    %v692 = vstv %s691
    %v693 = vmul.f32 %v300, %v692
    %v694 = vadd.f32 %v690, %v693
    %s695 = sld [smem:[#allocation10 + $0x82]]
    %v696 = vstv %s695
    %v697 = vmul.f32 %v343, %v696
    %v698 = vadd.f32 %v694, %v697
    %s699 = sld [smem:[#allocation10 + $0x83]]
    %v700 = vstv %s699
    %v701 = vmul.f32 %v386, %v700
    %v702 = vadd.f32 %v698, %v701
    %s703 = sld [smem:[#allocation10 + $0x84]]
    %v704 = vstv %s703
    %v705 = vmul.f32 %v429, %v704
    %v706 = vadd.f32 %v702, %v705
    %s707 = sld [smem:[#allocation10 + $0x85]]
    %v708 = vstv %s707
    %v709 = vmul.f32 %v472, %v708
    %v710 = vadd.f32 %v706, %v709
    %s711 = sld [smem:[#allocation10 + $0x86]]
    %v712 = vstv %s711
    %v713 = vmul.f32 %v515, %v712
    %v714 = vadd.f32 %v710, %v713
    %s715 = sld [smem:[#allocation10 + $0x87]]
    %v716 = vstv %s715
    %v717 = vmul.f32 %v558, %v716
    %v718 = vadd.f32 %v714, %v717
    %s719 = sld [smem:[#allocation10 + $0x88]]
    %v720 = vstv %s719
    %v721 = vmul.f32 %v601, %v720
    %v722 = vadd.f32 %v718, %v721
    %s723 = sld [smem:[#allocation10 + $0x89]]
    %v724 = vstv %s723
    %v725 = vmul.f32 %v644, %v724
    %v726 = vadd.f32 %v722, %v725
    %s727 = sld [smem:[#allocation12 + $0x1]]
    %v728 = vstv %s727
    %v729 = vadd.f32 %v726, %v728
    %s730 = scalar_lea.vmem [#allocation13], 8
    %731 = vst [vmem:[%s730] sm:$0xff] %v729
    // Predicated region
    $region54: #{tpu_custom_call.1} parent=1 // pred_check
      _
    $region55: #{tpu_custom_call.1} parent=1 // pred_check_branch
      %733 = sbr.rel (0) target = $region57
    $region56: #{tpu_custom_call.1} parent=1 // pred_region
      %735 = vsyncadd [#allocation3], 0
      %s736 = sshll.u32 [#allocation13], 4
      %s737 = int_to_ptr.vmem [resolvable:$true] %s736
      %s738 = sshll.u32 %s7, 4
      %s739 = int_to_ptr.hbm [resolvable:$true] %s738
      %744 = dma.vmem_to_hbm [thread:$0]  %s737, 256, %s739, [#allocation3], 128, 128, 8
    $region57: #{tpu_custom_call.1} parent=1 // pred_fallthru
      _
    // Predicated region
    $region58: #{tpu_custom_call.1} parent=1 // pred_check
      _
    $region59: #{tpu_custom_call.1} parent=1 // pred_check_branch
      %746 = sbr.rel (0) target = $region61
    $region60: #{tpu_custom_call.1} parent=1 // pred_region
      %748 = dma.done [#allocation3], 256
    $region61: #{tpu_custom_call.1} parent=1 // pred_fallthru
      _
    %749 = vsyncpa [#allocation3], 1
    %750 = vsyncpa [#allocation4], 1
    %751 = vsyncpa [#allocation5], 1
    %752 = vsyncpa [#allocation7], 1
    %753 = vsyncpa [#allocation11], 1

</llo_original>
